<compile_context>
chip_gen: v7x
topology: tpu7x:2x2x1
jax: 0.10.0
libtpu: 0.0.40
codegen_flags: <defaults>
</compile_context>

<pallas_src>
import functools

import jax
import jax.numpy as jnp
from jax import lax
from jax.experimental import pallas as pl
from jax.experimental.pallas import tpu as pltpu

BP = 8  # padded batch = f32 sublane width; keeps every (B, .) tile aligned


# ----------------------- Fused LSTM + CLIP-head kernel -----------------------

def clip_fused_kernel(x_ref, len_ref, h0_ref, c0_ref,
                      wih_ref, whh_i_ref, whh_f_ref, whh_g_ref, whh_o_ref,
                      b_ref, lan_ref, wi_ref, bi_ref, wt_ref, bt_ref,
                      ln_g_ref, ln_o_ref, scale_ref, logits_ref, *, T, H):
    f32 = jnp.float32
    bf16 = jnp.bfloat16

    def mxu(a, b):  # bf16 operands, f32 accumulation (single MXU pass)
        return jnp.dot(a, b, preferred_element_type=f32)

    # ---- Hoisted input projection: one MXU push for all T timesteps. ----
    # (T*BP, I) @ (I, 4H) + (1, 4H)  ->  (T*BP, 4H)
    gx = mxu(x_ref[...].astype(bf16), wih_ref[...]) + b_ref[...]
    # Per-gate lane slices done ONCE, outside the serial chain.
    gx_i = gx[:, 0 * H:1 * H]
    gx_f = gx[:, 1 * H:2 * H]
    gx_g = gx[:, 2 * H:3 * H]
    gx_o = gx[:, 3 * H:4 * H]

    whh_i = whh_i_ref[...]          # (H, H) bf16, loaded once
    whh_f = whh_f_ref[...]
    whh_g = whh_g_ref[...]
    whh_o = whh_o_ref[...]
    lengths = len_ref[...]          # (BP, 1) int32
    h = h0_ref[...]                 # (BP, H) f32
    c = c0_ref[...]                 # (BP, H) f32

    # ---- Serial recurrence, fully unrolled (static T). ----
    for t in range(T):
        r = t * BP                  # sublane-aligned row slice of gx_*
        hb = h.astype(bf16)
        i_g = jax.nn.sigmoid(gx_i[r:r + BP] + mxu(hb, whh_i))
        f_g = jax.nn.sigmoid(gx_f[r:r + BP] + mxu(hb, whh_f))
        g_g = jnp.tanh(gx_g[r:r + BP] + mxu(hb, whh_g))
        o_g = jax.nn.sigmoid(gx_o[r:r + BP] + mxu(hb, whh_o))

        c_new = f_g * c + i_g * g_g
        h_new = o_g * jnp.tanh(c_new)

        keep = t < lengths          # (BP, 1) bool: pack_padded final-state gate
        c = jnp.where(keep, c_new, c)
        h = jnp.where(keep, h_new, h)

    # ---- Head: Linear on both branches, ONE fused LayerNorm pass. ----
    pre_vis = mxu(h.astype(bf16), wi_ref[...]) + bi_ref[...]            # (BP, H)
    pre_lan = mxu(lan_ref[...].astype(bf16), wt_ref[...]) + bt_ref[...]  # (BP, H)
    pre = jnp.concatenate([pre_vis, pre_lan], axis=0)                   # (2BP, H)

    mean = jnp.mean(pre, axis=-1, keepdims=True)
    var = jnp.mean((pre - mean) ** 2, axis=-1, keepdims=True)
    z = (pre - mean) * lax.rsqrt(var + 1e-5) * ln_g_ref[...] + ln_o_ref[...]

    vis = z[:BP].astype(bf16)
    lan = z[BP:].astype(bf16)
    logits_ref[...] = lax.dot_general(
        vis, lan, dimension_numbers=(((1,), (1,)), ((), ())),
        preferred_element_type=f32) * scale_ref[0, 0]


# ---------------------- One-time parameter packing (init) --------------------

def pack_clip_params(params):
    """All transposes / splits / casts done once, OFF the per-call hot path."""
    H = params["w_hh"].shape[1]
    bf16 = jnp.bfloat16
    f32 = jnp.float32
    whh = params["w_hh"].T.astype(bf16)                      # (H, 4H)
    return {
        "wih": params["w_ih"].T.astype(bf16),                # (I, 4H)
        "whh_i": whh[:, 0 * H:1 * H],
        "whh_f": whh[:, 1 * H:2 * H],
        "whh_g": whh[:, 2 * H:3 * H],
        "whh_o": whh[:, 3 * H:4 * H],
        "b": (params["b_ih"] + params["b_hh"])[None, :].astype(f32),
        "wi": params["W_i"].T.astype(bf16),
        "bi": params["b_i"][None, :].astype(f32),
        "wt": params["W_t"].T.astype(bf16),
        "bt": params["b_t"][None, :].astype(f32),
        "ln_g": jnp.concatenate(
            [jnp.tile(params["g_i"][None, :], (BP, 1)),
             jnp.tile(params["g_t"][None, :], (BP, 1))], axis=0).astype(f32),
        "ln_o": jnp.concatenate(
            [jnp.tile(params["o_i"][None, :], (BP, 1)),
             jnp.tile(params["o_t"][None, :], (BP, 1))], axis=0).astype(f32),
        "scale": jnp.exp(params["temperature"]).reshape(1, 1).astype(f32),
    }


# --------------------------------- Wrapper ----------------------------------

@jax.jit
def clip_forward(x_pad, lengths, h0, c0, packed, lan_input):
    T, B, I = x_pad.shape
    H = h0.shape[-1]
    pb = BP - B

    # Pad batch to the sublane width; padded rows get length 0 (never updated)
    # and are sliced out of the logits below.
    x_p = jnp.pad(x_pad, ((0, 0), (0, pb), (0, 0))).reshape(T * BP, I)
    len_p = jnp.pad(lengths.astype(jnp.int32), (0, pb)).reshape(BP, 1)
    h0_p = jnp.pad(h0, ((0, pb), (0, 0)))
    c0_p = jnp.pad(c0, ((0, pb), (0, 0)))
    lan_p = jnp.pad(lan_input, ((0, pb), (0, 0)))

    vmem = pl.BlockSpec(memory_space=pltpu.MemorySpace.VMEM)
    smem = pl.BlockSpec(memory_space=pltpu.MemorySpace.SMEM)

    logits_p = pl.pallas_call(
        functools.partial(clip_fused_kernel, T=T, H=H),
        out_shape=jax.ShapeDtypeStruct((BP, BP), jnp.float32),
        in_specs=[vmem] * 17 + [smem],
        out_specs=vmem,
    )(
        x_p, len_p, h0_p, c0_p,
        packed["wih"], packed["whh_i"], packed["whh_f"],
        packed["whh_g"], packed["whh_o"], packed["b"],
        lan_p, packed["wi"], packed["bi"], packed["wt"], packed["bt"],
        packed["ln_g"], packed["ln_o"], packed["scale"],
    )
    return logits_p[:B, :B]


# ---------------------------- Pure-JAX reference -----------------------------

def clip_reference(x_pad, lengths, h0, c0, params, lan_input):
    """Mirrors the kernel's MXU numerics: bf16 operands, f32 accumulation."""
    T, B, _ = x_pad.shape
    H = h0.shape[-1]
    bf16 = jnp.bfloat16

    def bdot(a, b):
        return jnp.dot(a.astype(bf16), b.astype(bf16),
                       preferred_element_type=jnp.float32)

    h, c = h0, c0
    for t in range(T):
        gates = (bdot(x_pad[t], params["w_ih"].T) + params["b_ih"]
                 + bdot(h, params["w_hh"].T) + params["b_hh"])
        i_g = jax.nn.sigmoid(gates[:, 0 * H:1 * H])
        f_g = jax.nn.sigmoid(gates[:, 1 * H:2 * H])
        g_g = jnp.tanh(gates[:, 2 * H:3 * H])
        o_g = jax.nn.sigmoid(gates[:, 3 * H:4 * H])
        c_new = f_g * c + i_g * g_g
        h_new = o_g * jnp.tanh(c_new)
        m = (t < lengths)[:, None].astype(jnp.float32)
        c = m * c_new + (1.0 - m) * c
        h = m * h_new + (1.0 - m) * h

    def ln(y, g, o):
        mu = y.mean(-1, keepdims=True)
        var = ((y - mu) ** 2).mean(-1, keepdims=True)
        return (y - mu) * lax.rsqrt(var + 1e-5) * g + o

    vis = ln(bdot(h, params["W_i"].T) + params["b_i"],
             params["g_i"], params["o_i"])
    lan = ln(bdot(lan_input, params["W_t"].T) + params["b_t"],
             params["g_t"], params["o_t"])
    return bdot(vis, lan.T) * jnp.exp(params["temperature"])


# ----------------------------------- Main ------------------------------------

if __name__ == "__main__":
    B, I, H, T = 4, 16, 32, 8   # batch, input_size, hidden_size, max seq len
    key = jax.random.PRNGKey(0)
    ks = jax.random.split(key, 16)

    # Deterministic "parameters" (shapes follow nn.LSTM / nn.Linear / LayerNorm).
    params = {
        "w_ih": 0.1 * jax.random.normal(ks[0], (4 * H, I), jnp.float32),
        "w_hh": 0.1 * jax.random.normal(ks[1], (4 * H, H), jnp.float32),
        "b_ih": 0.1 * jax.random.normal(ks[2], (4 * H,), jnp.float32),
        "b_hh": 0.1 * jax.random.normal(ks[3], (4 * H,), jnp.float32),
        "W_i": 0.1 * jax.random.normal(ks[4], (H, H), jnp.float32),
        "b_i": 0.1 * jax.random.normal(ks[5], (H,), jnp.float32),
        "W_t": 0.1 * jax.random.normal(ks[6], (H, H), jnp.float32),
        "b_t": 0.1 * jax.random.normal(ks[7], (H,), jnp.float32),
        "g_i": jnp.ones((H,), jnp.float32),
        "o_i": jnp.zeros((H,), jnp.float32),
        "g_t": jnp.ones((H,), jnp.float32),
        "o_t": jnp.zeros((H,), jnp.float32),
        "temperature": jnp.array(jnp.log(1.0 / 0.07), jnp.float32),
    }
    packed = pack_clip_params(params)          # one-time, off the hot path

    # Variable-length visual sequences, padded time-major (like pad_sequence).
    lengths = jnp.array([8, 5, 7, 3], jnp.int32)
    x_pad = jax.random.normal(ks[8], (T, B, I), jnp.float32)
    t_idx = jnp.arange(T)[:, None]
    pad_mask = (t_idx < lengths[None, :]).astype(jnp.float32)[..., None]
    x_pad = x_pad * pad_mask  # zero padding like pack_padded_sequence hides it

    # torch.randn h_0 / c_0 in forward -> deterministic PRNG here.
    h0 = jax.random.normal(ks[9], (B, H), jnp.float32)
    c0 = jax.random.normal(ks[10], (B, H), jnp.float32)

    lan_input = jax.random.normal(ks[11], (B, H), jnp.float32)

    logits = clip_forward(x_pad, lengths, h0, c0, packed, lan_input)
    jax.block_until_ready(logits)

    ref = clip_reference(x_pad, lengths, h0, c0, params, lan_input)
    assert logits.shape == (B, B)
    # Both sides use bf16 MXU operands with f32 accumulation; residual error is
    # only accumulation-order / rsqrt noise amplified by LN and exp(temp)~14.3,
    # so 2e-3 (≈1e-4 relative to the logit scale) is a tight, robust bound.
    assert jnp.allclose(logits, ref, atol=2e-3, rtol=2e-3), (
        f"max err {jnp.max(jnp.abs(logits - ref))}")

    print("KERNEL_OK")
</pallas_src>

<mosaic_0001>
module attributes {stable_mosaic.version = 11 : i64} {
  func.func @clip_fused_kernel(%arg0: memref<64x16xf32, #tpu.memory_space<vmem>>, %arg1: memref<8x1xi32, #tpu.memory_space<vmem>>, %arg2: memref<8x32xf32, #tpu.memory_space<vmem>>, %arg3: memref<8x32xf32, #tpu.memory_space<vmem>>, %arg4: memref<16x128xbf16, #tpu.memory_space<vmem>>, %arg5: memref<32x32xbf16, #tpu.memory_space<vmem>>, %arg6: memref<32x32xbf16, #tpu.memory_space<vmem>>, %arg7: memref<32x32xbf16, #tpu.memory_space<vmem>>, %arg8: memref<32x32xbf16, #tpu.memory_space<vmem>>, %arg9: memref<1x128xf32, #tpu.memory_space<vmem>>, %arg10: memref<8x32xf32, #tpu.memory_space<vmem>>, %arg11: memref<32x32xbf16, #tpu.memory_space<vmem>>, %arg12: memref<1x32xf32, #tpu.memory_space<vmem>>, %arg13: memref<32x32xbf16, #tpu.memory_space<vmem>>, %arg14: memref<1x32xf32, #tpu.memory_space<vmem>>, %arg15: memref<16x32xf32, #tpu.memory_space<vmem>>, %arg16: memref<16x32xf32, #tpu.memory_space<vmem>>, %arg17: memref<1x1xf32, #tpu.memory_space<smem>>, %arg18: memref<8x8xf32, #tpu.memory_space<vmem>>) attributes {dimension_semantics = [], scalar_prefetch = 0 : i64, scratch_operands = 0 : i64, tpu.core_type = #tpu.core_type<tc>} {
    %c0 = arith.constant 0 : index
    %c0_0 = arith.constant 0 : index
    %0 = vector.load %arg0[%c0, %c0_0] : memref<64x16xf32, #tpu.memory_space<vmem>>, vector<64x16xf32>
    %1 = arith.truncf %0 : vector<64x16xf32> to vector<64x16xbf16>
    %c0_1 = arith.constant 0 : index
    %c0_2 = arith.constant 0 : index
    %2 = vector.load %arg4[%c0_1, %c0_2] : memref<16x128xbf16, #tpu.memory_space<vmem>>, vector<16x128xbf16>
    %cst = arith.constant dense<0.000000e+00> : vector<64x128xf32>
    %3 = tpu.matmul %1, %2, %cst {dimension_numbers = #tpu.dot_dimension_numbers<[1], [0], [0], [1], [0, 0, 1, 1], [], []>} : vector<64x16xbf16>, vector<16x128xbf16>, vector<64x128xf32> -> vector<64x128xf32>
    %c0_3 = arith.constant 0 : index
    %c0_4 = arith.constant 0 : index
    %4 = vector.load %arg9[%c0_3, %c0_4] : memref<1x128xf32, #tpu.memory_space<vmem>>, vector<1x128xf32>
    %5 = vector.broadcast %4 : vector<1x128xf32> to vector<64x128xf32>
    %6 = arith.addf %3, %5 : vector<64x128xf32>
    %7 = vector.extract_strided_slice %6 {offsets = [0, 0], sizes = [64, 32], strides = [1, 1]} : vector<64x128xf32> to vector<64x32xf32>
    %8 = vector.extract_strided_slice %6 {offsets = [0, 32], sizes = [64, 32], strides = [1, 1]} : vector<64x128xf32> to vector<64x32xf32>
    %9 = vector.extract_strided_slice %6 {offsets = [0, 64], sizes = [64, 32], strides = [1, 1]} : vector<64x128xf32> to vector<64x32xf32>
    %10 = vector.extract_strided_slice %6 {offsets = [0, 96], sizes = [64, 32], strides = [1, 1]} : vector<64x128xf32> to vector<64x32xf32>
    %c0_5 = arith.constant 0 : index
    %c0_6 = arith.constant 0 : index
    %11 = vector.load %arg5[%c0_5, %c0_6] : memref<32x32xbf16, #tpu.memory_space<vmem>>, vector<32x32xbf16>
    %c0_7 = arith.constant 0 : index
    %c0_8 = arith.constant 0 : index
    %12 = vector.load %arg6[%c0_7, %c0_8] : memref<32x32xbf16, #tpu.memory_space<vmem>>, vector<32x32xbf16>
    %c0_9 = arith.constant 0 : index
    %c0_10 = arith.constant 0 : index
    %13 = vector.load %arg7[%c0_9, %c0_10] : memref<32x32xbf16, #tpu.memory_space<vmem>>, vector<32x32xbf16>
    %c0_11 = arith.constant 0 : index
    %c0_12 = arith.constant 0 : index
    %14 = vector.load %arg8[%c0_11, %c0_12] : memref<32x32xbf16, #tpu.memory_space<vmem>>, vector<32x32xbf16>
    %c0_13 = arith.constant 0 : index
    %c0_14 = arith.constant 0 : index
    %15 = vector.load %arg1[%c0_13, %c0_14] : memref<8x1xi32, #tpu.memory_space<vmem>>, vector<8x1xi32>
    %c0_15 = arith.constant 0 : index
    %c0_16 = arith.constant 0 : index
    %16 = vector.load %arg2[%c0_15, %c0_16] : memref<8x32xf32, #tpu.memory_space<vmem>>, vector<8x32xf32>
    %c0_17 = arith.constant 0 : index
    %c0_18 = arith.constant 0 : index
    %17 = vector.load %arg3[%c0_17, %c0_18] : memref<8x32xf32, #tpu.memory_space<vmem>>, vector<8x32xf32>
    %18 = arith.truncf %16 : vector<8x32xf32> to vector<8x32xbf16>
    %19 = vector.extract_strided_slice %7 {offsets = [0, 0], sizes = [8, 32], strides = [1, 1]} : vector<64x32xf32> to vector<8x32xf32>
    %cst_19 = arith.constant dense<0.000000e+00> : vector<8x32xf32>
    %20 = tpu.matmul %18, %11, %cst_19 {dimension_numbers = #tpu.dot_dimension_numbers<[1], [0], [0], [1], [0, 0, 1, 1], [], []>} : vector<8x32xbf16>, vector<32x32xbf16>, vector<8x32xf32> -> vector<8x32xf32>
    %21 = arith.addf %19, %20 : vector<8x32xf32>
    %22 = arith.negf %21 : vector<8x32xf32>
    %23 = math.exp %22 : vector<8x32xf32>
    %cst_20 = arith.constant 1.000000e+00 : f32
    %24 = vector.broadcast %cst_20 : f32 to vector<8x32xf32>
    %25 = arith.addf %24, %23 : vector<8x32xf32>
    %26 = arith.divf %24, %25 : vector<8x32xf32>
    %27 = vector.extract_strided_slice %8 {offsets = [0, 0], sizes = [8, 32], strides = [1, 1]} : vector<64x32xf32> to vector<8x32xf32>
    %cst_21 = arith.constant dense<0.000000e+00> : vector<8x32xf32>
    %28 = tpu.matmul %18, %12, %cst_21 {dimension_numbers = #tpu.dot_dimension_numbers<[1], [0], [0], [1], [0, 0, 1, 1], [], []>} : vector<8x32xbf16>, vector<32x32xbf16>, vector<8x32xf32> -> vector<8x32xf32>
    %29 = arith.addf %27, %28 : vector<8x32xf32>
    %30 = arith.negf %29 : vector<8x32xf32>
    %31 = math.exp %30 : vector<8x32xf32>
    %cst_22 = arith.constant 1.000000e+00 : f32
    %32 = vector.broadcast %cst_22 : f32 to vector<8x32xf32>
    %33 = arith.addf %32, %31 : vector<8x32xf32>
    %34 = arith.divf %32, %33 : vector<8x32xf32>
    %35 = vector.extract_strided_slice %9 {offsets = [0, 0], sizes = [8, 32], strides = [1, 1]} : vector<64x32xf32> to vector<8x32xf32>
    %cst_23 = arith.constant dense<0.000000e+00> : vector<8x32xf32>
    %36 = tpu.matmul %18, %13, %cst_23 {dimension_numbers = #tpu.dot_dimension_numbers<[1], [0], [0], [1], [0, 0, 1, 1], [], []>} : vector<8x32xbf16>, vector<32x32xbf16>, vector<8x32xf32> -> vector<8x32xf32>
    %37 = arith.addf %35, %36 : vector<8x32xf32>
    %38 = math.tanh %37 : vector<8x32xf32>
    %39 = vector.extract_strided_slice %10 {offsets = [0, 0], sizes = [8, 32], strides = [1, 1]} : vector<64x32xf32> to vector<8x32xf32>
    %cst_24 = arith.constant dense<0.000000e+00> : vector<8x32xf32>
    %40 = tpu.matmul %18, %14, %cst_24 {dimension_numbers = #tpu.dot_dimension_numbers<[1], [0], [0], [1], [0, 0, 1, 1], [], []>} : vector<8x32xbf16>, vector<32x32xbf16>, vector<8x32xf32> -> vector<8x32xf32>
    %41 = arith.addf %39, %40 : vector<8x32xf32>
    %42 = arith.negf %41 : vector<8x32xf32>
    %43 = math.exp %42 : vector<8x32xf32>
    %cst_25 = arith.constant 1.000000e+00 : f32
    %44 = vector.broadcast %cst_25 : f32 to vector<8x32xf32>
    %45 = arith.addf %44, %43 : vector<8x32xf32>
    %46 = arith.divf %44, %45 : vector<8x32xf32>
    %47 = arith.mulf %34, %17 : vector<8x32xf32>
    %48 = arith.mulf %26, %38 : vector<8x32xf32>
    %49 = arith.addf %47, %48 : vector<8x32xf32>
    %50 = math.tanh %49 : vector<8x32xf32>
    %51 = arith.mulf %46, %50 : vector<8x32xf32>
    %c0_i32 = arith.constant 0 : i32
    %52 = vector.broadcast %c0_i32 : i32 to vector<8x1xi32>
    %53 = arith.cmpi sgt, %15, %52 : vector<8x1xi32>
    %54 = vector.shape_cast %53 : vector<8x1xi1> to vector<8x1xi1>
    %55 = vector.broadcast %54 : vector<8x1xi1> to vector<8x32xi1>
    %56 = arith.select %55, %49, %17 : vector<8x32xi1>, vector<8x32xf32>
    %57 = vector.shape_cast %53 : vector<8x1xi1> to vector<8x1xi1>
    %58 = vector.broadcast %57 : vector<8x1xi1> to vector<8x32xi1>
    %59 = arith.select %58, %51, %16 : vector<8x32xi1>, vector<8x32xf32>
    %60 = arith.truncf %59 : vector<8x32xf32> to vector<8x32xbf16>
    %61 = vector.extract_strided_slice %7 {offsets = [8, 0], sizes = [8, 32], strides = [1, 1]} : vector<64x32xf32> to vector<8x32xf32>
    %cst_26 = arith.constant dense<0.000000e+00> : vector<8x32xf32>
    %62 = tpu.matmul %60, %11, %cst_26 {dimension_numbers = #tpu.dot_dimension_numbers<[1], [0], [0], [1], [0, 0, 1, 1], [], []>} : vector<8x32xbf16>, vector<32x32xbf16>, vector<8x32xf32> -> vector<8x32xf32>
    %63 = arith.addf %61, %62 : vector<8x32xf32>
    %64 = arith.negf %63 : vector<8x32xf32>
    %65 = math.exp %64 : vector<8x32xf32>
    %cst_27 = arith.constant 1.000000e+00 : f32
    %66 = vector.broadcast %cst_27 : f32 to vector<8x32xf32>
    %67 = arith.addf %66, %65 : vector<8x32xf32>
    %68 = arith.divf %66, %67 : vector<8x32xf32>
    %69 = vector.extract_strided_slice %8 {offsets = [8, 0], sizes = [8, 32], strides = [1, 1]} : vector<64x32xf32> to vector<8x32xf32>
    %cst_28 = arith.constant dense<0.000000e+00> : vector<8x32xf32>
    %70 = tpu.matmul %60, %12, %cst_28 {dimension_numbers = #tpu.dot_dimension_numbers<[1], [0], [0], [1], [0, 0, 1, 1], [], []>} : vector<8x32xbf16>, vector<32x32xbf16>, vector<8x32xf32> -> vector<8x32xf32>
    %71 = arith.addf %69, %70 : vector<8x32xf32>
    %72 = arith.negf %71 : vector<8x32xf32>
    %73 = math.exp %72 : vector<8x32xf32>
    %cst_29 = arith.constant 1.000000e+00 : f32
    %74 = vector.broadcast %cst_29 : f32 to vector<8x32xf32>
    %75 = arith.addf %74, %73 : vector<8x32xf32>
    %76 = arith.divf %74, %75 : vector<8x32xf32>
    %77 = vector.extract_strided_slice %9 {offsets = [8, 0], sizes = [8, 32], strides = [1, 1]} : vector<64x32xf32> to vector<8x32xf32>
    %cst_30 = arith.constant dense<0.000000e+00> : vector<8x32xf32>
    %78 = tpu.matmul %60, %13, %cst_30 {dimension_numbers = #tpu.dot_dimension_numbers<[1], [0], [0], [1], [0, 0, 1, 1], [], []>} : vector<8x32xbf16>, vector<32x32xbf16>, vector<8x32xf32> -> vector<8x32xf32>
    %79 = arith.addf %77, %78 : vector<8x32xf32>
    %80 = math.tanh %79 : vector<8x32xf32>
    %81 = vector.extract_strided_slice %10 {offsets = [8, 0], sizes = [8, 32], strides = [1, 1]} : vector<64x32xf32> to vector<8x32xf32>
    %cst_31 = arith.constant dense<0.000000e+00> : vector<8x32xf32>
    %82 = tpu.matmul %60, %14, %cst_31 {dimension_numbers = #tpu.dot_dimension_numbers<[1], [0], [0], [1], [0, 0, 1, 1], [], []>} : vector<8x32xbf16>, vector<32x32xbf16>, vector<8x32xf32> -> vector<8x32xf32>
    %83 = arith.addf %81, %82 : vector<8x32xf32>
    %84 = arith.negf %83 : vector<8x32xf32>
    %85 = math.exp %84 : vector<8x32xf32>
    %cst_32 = arith.constant 1.000000e+00 : f32
    %86 = vector.broadcast %cst_32 : f32 to vector<8x32xf32>
    %87 = arith.addf %86, %85 : vector<8x32xf32>
    %88 = arith.divf %86, %87 : vector<8x32xf32>
    %89 = arith.mulf %76, %56 : vector<8x32xf32>
    %90 = arith.mulf %68, %80 : vector<8x32xf32>
    %91 = arith.addf %89, %90 : vector<8x32xf32>
    %92 = math.tanh %91 : vector<8x32xf32>
    %93 = arith.mulf %88, %92 : vector<8x32xf32>
    %c1_i32 = arith.constant 1 : i32
    %94 = vector.broadcast %c1_i32 : i32 to vector<8x1xi32>
    %95 = arith.cmpi sgt, %15, %94 : vector<8x1xi32>
    %96 = vector.shape_cast %95 : vector<8x1xi1> to vector<8x1xi1>
    %97 = vector.broadcast %96 : vector<8x1xi1> to vector<8x32xi1>
    %98 = arith.select %97, %91, %56 : vector<8x32xi1>, vector<8x32xf32>
    %99 = vector.shape_cast %95 : vector<8x1xi1> to vector<8x1xi1>
    %100 = vector.broadcast %99 : vector<8x1xi1> to vector<8x32xi1>
    %101 = arith.select %100, %93, %59 : vector<8x32xi1>, vector<8x32xf32>
    %102 = arith.truncf %101 : vector<8x32xf32> to vector<8x32xbf16>
    %103 = vector.extract_strided_slice %7 {offsets = [16, 0], sizes = [8, 32], strides = [1, 1]} : vector<64x32xf32> to vector<8x32xf32>
    %cst_33 = arith.constant dense<0.000000e+00> : vector<8x32xf32>
    %104 = tpu.matmul %102, %11, %cst_33 {dimension_numbers = #tpu.dot_dimension_numbers<[1], [0], [0], [1], [0, 0, 1, 1], [], []>} : vector<8x32xbf16>, vector<32x32xbf16>, vector<8x32xf32> -> vector<8x32xf32>
    %105 = arith.addf %103, %104 : vector<8x32xf32>
    %106 = arith.negf %105 : vector<8x32xf32>
    %107 = math.exp %106 : vector<8x32xf32>
    %cst_34 = arith.constant 1.000000e+00 : f32
    %108 = vector.broadcast %cst_34 : f32 to vector<8x32xf32>
    %109 = arith.addf %108, %107 : vector<8x32xf32>
    %110 = arith.divf %108, %109 : vector<8x32xf32>
    %111 = vector.extract_strided_slice %8 {offsets = [16, 0], sizes = [8, 32], strides = [1, 1]} : vector<64x32xf32> to vector<8x32xf32>
    %cst_35 = arith.constant dense<0.000000e+00> : vector<8x32xf32>
    %112 = tpu.matmul %102, %12, %cst_35 {dimension_numbers = #tpu.dot_dimension_numbers<[1], [0], [0], [1], [0, 0, 1, 1], [], []>} : vector<8x32xbf16>, vector<32x32xbf16>, vector<8x32xf32> -> vector<8x32xf32>
    %113 = arith.addf %111, %112 : vector<8x32xf32>
    %114 = arith.negf %113 : vector<8x32xf32>
    %115 = math.exp %114 : vector<8x32xf32>
    %cst_36 = arith.constant 1.000000e+00 : f32
    %116 = vector.broadcast %cst_36 : f32 to vector<8x32xf32>
    %117 = arith.addf %116, %115 : vector<8x32xf32>
    %118 = arith.divf %116, %117 : vector<8x32xf32>
    %119 = vector.extract_strided_slice %9 {offsets = [16, 0], sizes = [8, 32], strides = [1, 1]} : vector<64x32xf32> to vector<8x32xf32>
    %cst_37 = arith.constant dense<0.000000e+00> : vector<8x32xf32>
    %120 = tpu.matmul %102, %13, %cst_37 {dimension_numbers = #tpu.dot_dimension_numbers<[1], [0], [0], [1], [0, 0, 1, 1], [], []>} : vector<8x32xbf16>, vector<32x32xbf16>, vector<8x32xf32> -> vector<8x32xf32>
    %121 = arith.addf %119, %120 : vector<8x32xf32>
    %122 = math.tanh %121 : vector<8x32xf32>
    %123 = vector.extract_strided_slice %10 {offsets = [16, 0], sizes = [8, 32], strides = [1, 1]} : vector<64x32xf32> to vector<8x32xf32>
    %cst_38 = arith.constant dense<0.000000e+00> : vector<8x32xf32>
    %124 = tpu.matmul %102, %14, %cst_38 {dimension_numbers = #tpu.dot_dimension_numbers<[1], [0], [0], [1], [0, 0, 1, 1], [], []>} : vector<8x32xbf16>, vector<32x32xbf16>, vector<8x32xf32> -> vector<8x32xf32>
    %125 = arith.addf %123, %124 : vector<8x32xf32>
    %126 = arith.negf %125 : vector<8x32xf32>
    %127 = math.exp %126 : vector<8x32xf32>
    %cst_39 = arith.constant 1.000000e+00 : f32
    %128 = vector.broadcast %cst_39 : f32 to vector<8x32xf32>
    %129 = arith.addf %128, %127 : vector<8x32xf32>
    %130 = arith.divf %128, %129 : vector<8x32xf32>
    %131 = arith.mulf %118, %98 : vector<8x32xf32>
    %132 = arith.mulf %110, %122 : vector<8x32xf32>
    %133 = arith.addf %131, %132 : vector<8x32xf32>
    %134 = math.tanh %133 : vector<8x32xf32>
    %135 = arith.mulf %130, %134 : vector<8x32xf32>
    %c2_i32 = arith.constant 2 : i32
    %136 = vector.broadcast %c2_i32 : i32 to vector<8x1xi32>
    %137 = arith.cmpi sgt, %15, %136 : vector<8x1xi32>
    %138 = vector.shape_cast %137 : vector<8x1xi1> to vector<8x1xi1>
    %139 = vector.broadcast %138 : vector<8x1xi1> to vector<8x32xi1>
    %140 = arith.select %139, %133, %98 : vector<8x32xi1>, vector<8x32xf32>
    %141 = vector.shape_cast %137 : vector<8x1xi1> to vector<8x1xi1>
    %142 = vector.broadcast %141 : vector<8x1xi1> to vector<8x32xi1>
    %143 = arith.select %142, %135, %101 : vector<8x32xi1>, vector<8x32xf32>
    %144 = arith.truncf %143 : vector<8x32xf32> to vector<8x32xbf16>
    %145 = vector.extract_strided_slice %7 {offsets = [24, 0], sizes = [8, 32], strides = [1, 1]} : vector<64x32xf32> to vector<8x32xf32>
    %cst_40 = arith.constant dense<0.000000e+00> : vector<8x32xf32>
    %146 = tpu.matmul %144, %11, %cst_40 {dimension_numbers = #tpu.dot_dimension_numbers<[1], [0], [0], [1], [0, 0, 1, 1], [], []>} : vector<8x32xbf16>, vector<32x32xbf16>, vector<8x32xf32> -> vector<8x32xf32>
    %147 = arith.addf %145, %146 : vector<8x32xf32>
    %148 = arith.negf %147 : vector<8x32xf32>
    %149 = math.exp %148 : vector<8x32xf32>
    %cst_41 = arith.constant 1.000000e+00 : f32
    %150 = vector.broadcast %cst_41 : f32 to vector<8x32xf32>
    %151 = arith.addf %150, %149 : vector<8x32xf32>
    %152 = arith.divf %150, %151 : vector<8x32xf32>
    %153 = vector.extract_strided_slice %8 {offsets = [24, 0], sizes = [8, 32], strides = [1, 1]} : vector<64x32xf32> to vector<8x32xf32>
    %cst_42 = arith.constant dense<0.000000e+00> : vector<8x32xf32>
    %154 = tpu.matmul %144, %12, %cst_42 {dimension_numbers = #tpu.dot_dimension_numbers<[1], [0], [0], [1], [0, 0, 1, 1], [], []>} : vector<8x32xbf16>, vector<32x32xbf16>, vector<8x32xf32> -> vector<8x32xf32>
    %155 = arith.addf %153, %154 : vector<8x32xf32>
    %156 = arith.negf %155 : vector<8x32xf32>
    %157 = math.exp %156 : vector<8x32xf32>
    %cst_43 = arith.constant 1.000000e+00 : f32
    %158 = vector.broadcast %cst_43 : f32 to vector<8x32xf32>
    %159 = arith.addf %158, %157 : vector<8x32xf32>
    %160 = arith.divf %158, %159 : vector<8x32xf32>
    %161 = vector.extract_strided_slice %9 {offsets = [24, 0], sizes = [8, 32], strides = [1, 1]} : vector<64x32xf32> to vector<8x32xf32>
    %cst_44 = arith.constant dense<0.000000e+00> : vector<8x32xf32>
    %162 = tpu.matmul %144, %13, %cst_44 {dimension_numbers = #tpu.dot_dimension_numbers<[1], [0], [0], [1], [0, 0, 1, 1], [], []>} : vector<8x32xbf16>, vector<32x32xbf16>, vector<8x32xf32> -> vector<8x32xf32>
    %163 = arith.addf %161, %162 : vector<8x32xf32>
    %164 = math.tanh %163 : vector<8x32xf32>
    %165 = vector.extract_strided_slice %10 {offsets = [24, 0], sizes = [8, 32], strides = [1, 1]} : vector<64x32xf32> to vector<8x32xf32>
    %cst_45 = arith.constant dense<0.000000e+00> : vector<8x32xf32>
    %166 = tpu.matmul %144, %14, %cst_45 {dimension_numbers = #tpu.dot_dimension_numbers<[1], [0], [0], [1], [0, 0, 1, 1], [], []>} : vector<8x32xbf16>, vector<32x32xbf16>, vector<8x32xf32> -> vector<8x32xf32>
    %167 = arith.addf %165, %166 : vector<8x32xf32>
    %168 = arith.negf %167 : vector<8x32xf32>
    %169 = math.exp %168 : vector<8x32xf32>
    %cst_46 = arith.constant 1.000000e+00 : f32
    %170 = vector.broadcast %cst_46 : f32 to vector<8x32xf32>
    %171 = arith.addf %170, %169 : vector<8x32xf32>
    %172 = arith.divf %170, %171 : vector<8x32xf32>
    %173 = arith.mulf %160, %140 : vector<8x32xf32>
    %174 = arith.mulf %152, %164 : vector<8x32xf32>
    %175 = arith.addf %173, %174 : vector<8x32xf32>
    %176 = math.tanh %175 : vector<8x32xf32>
    %177 = arith.mulf %172, %176 : vector<8x32xf32>
    %c3_i32 = arith.constant 3 : i32
    %178 = vector.broadcast %c3_i32 : i32 to vector<8x1xi32>
    %179 = arith.cmpi sgt, %15, %178 : vector<8x1xi32>
    %180 = vector.shape_cast %179 : vector<8x1xi1> to vector<8x1xi1>
    %181 = vector.broadcast %180 : vector<8x1xi1> to vector<8x32xi1>
    %182 = arith.select %181, %175, %140 : vector<8x32xi1>, vector<8x32xf32>
    %183 = vector.shape_cast %179 : vector<8x1xi1> to vector<8x1xi1>
    %184 = vector.broadcast %183 : vector<8x1xi1> to vector<8x32xi1>
    %185 = arith.select %184, %177, %143 : vector<8x32xi1>, vector<8x32xf32>
    %186 = arith.truncf %185 : vector<8x32xf32> to vector<8x32xbf16>
    %187 = vector.extract_strided_slice %7 {offsets = [32, 0], sizes = [8, 32], strides = [1, 1]} : vector<64x32xf32> to vector<8x32xf32>
    %cst_47 = arith.constant dense<0.000000e+00> : vector<8x32xf32>
    %188 = tpu.matmul %186, %11, %cst_47 {dimension_numbers = #tpu.dot_dimension_numbers<[1], [0], [0], [1], [0, 0, 1, 1], [], []>} : vector<8x32xbf16>, vector<32x32xbf16>, vector<8x32xf32> -> vector<8x32xf32>
    %189 = arith.addf %187, %188 : vector<8x32xf32>
    %190 = arith.negf %189 : vector<8x32xf32>
    %191 = math.exp %190 : vector<8x32xf32>
    %cst_48 = arith.constant 1.000000e+00 : f32
    %192 = vector.broadcast %cst_48 : f32 to vector<8x32xf32>
    %193 = arith.addf %192, %191 : vector<8x32xf32>
    %194 = arith.divf %192, %193 : vector<8x32xf32>
    %195 = vector.extract_strided_slice %8 {offsets = [32, 0], sizes = [8, 32], strides = [1, 1]} : vector<64x32xf32> to vector<8x32xf32>
    %cst_49 = arith.constant dense<0.000000e+00> : vector<8x32xf32>
    %196 = tpu.matmul %186, %12, %cst_49 {dimension_numbers = #tpu.dot_dimension_numbers<[1], [0], [0], [1], [0, 0, 1, 1], [], []>} : vector<8x32xbf16>, vector<32x32xbf16>, vector<8x32xf32> -> vector<8x32xf32>
    %197 = arith.addf %195, %196 : vector<8x32xf32>
    %198 = arith.negf %197 : vector<8x32xf32>
    %199 = math.exp %198 : vector<8x32xf32>
    %cst_50 = arith.constant 1.000000e+00 : f32
    %200 = vector.broadcast %cst_50 : f32 to vector<8x32xf32>
    %201 = arith.addf %200, %199 : vector<8x32xf32>
    %202 = arith.divf %200, %201 : vector<8x32xf32>
    %203 = vector.extract_strided_slice %9 {offsets = [32, 0], sizes = [8, 32], strides = [1, 1]} : vector<64x32xf32> to vector<8x32xf32>
    %cst_51 = arith.constant dense<0.000000e+00> : vector<8x32xf32>
    %204 = tpu.matmul %186, %13, %cst_51 {dimension_numbers = #tpu.dot_dimension_numbers<[1], [0], [0], [1], [0, 0, 1, 1], [], []>} : vector<8x32xbf16>, vector<32x32xbf16>, vector<8x32xf32> -> vector<8x32xf32>
    %205 = arith.addf %203, %204 : vector<8x32xf32>
    %206 = math.tanh %205 : vector<8x32xf32>
    %207 = vector.extract_strided_slice %10 {offsets = [32, 0], sizes = [8, 32], strides = [1, 1]} : vector<64x32xf32> to vector<8x32xf32>
    %cst_52 = arith.constant dense<0.000000e+00> : vector<8x32xf32>
    %208 = tpu.matmul %186, %14, %cst_52 {dimension_numbers = #tpu.dot_dimension_numbers<[1], [0], [0], [1], [0, 0, 1, 1], [], []>} : vector<8x32xbf16>, vector<32x32xbf16>, vector<8x32xf32> -> vector<8x32xf32>
    %209 = arith.addf %207, %208 : vector<8x32xf32>
    %210 = arith.negf %209 : vector<8x32xf32>
    %211 = math.exp %210 : vector<8x32xf32>
    %cst_53 = arith.constant 1.000000e+00 : f32
    %212 = vector.broadcast %cst_53 : f32 to vector<8x32xf32>
    %213 = arith.addf %212, %211 : vector<8x32xf32>
    %214 = arith.divf %212, %213 : vector<8x32xf32>
    %215 = arith.mulf %202, %182 : vector<8x32xf32>
    %216 = arith.mulf %194, %206 : vector<8x32xf32>
    %217 = arith.addf %215, %216 : vector<8x32xf32>
    %218 = math.tanh %217 : vector<8x32xf32>
    %219 = arith.mulf %214, %218 : vector<8x32xf32>
    %c4_i32 = arith.constant 4 : i32
    %220 = vector.broadcast %c4_i32 : i32 to vector<8x1xi32>
    %221 = arith.cmpi sgt, %15, %220 : vector<8x1xi32>
    %222 = vector.shape_cast %221 : vector<8x1xi1> to vector<8x1xi1>
    %223 = vector.broadcast %222 : vector<8x1xi1> to vector<8x32xi1>
    %224 = arith.select %223, %217, %182 : vector<8x32xi1>, vector<8x32xf32>
    %225 = vector.shape_cast %221 : vector<8x1xi1> to vector<8x1xi1>
    %226 = vector.broadcast %225 : vector<8x1xi1> to vector<8x32xi1>
    %227 = arith.select %226, %219, %185 : vector<8x32xi1>, vector<8x32xf32>
    %228 = arith.truncf %227 : vector<8x32xf32> to vector<8x32xbf16>
    %229 = vector.extract_strided_slice %7 {offsets = [40, 0], sizes = [8, 32], strides = [1, 1]} : vector<64x32xf32> to vector<8x32xf32>
    %cst_54 = arith.constant dense<0.000000e+00> : vector<8x32xf32>
    %230 = tpu.matmul %228, %11, %cst_54 {dimension_numbers = #tpu.dot_dimension_numbers<[1], [0], [0], [1], [0, 0, 1, 1], [], []>} : vector<8x32xbf16>, vector<32x32xbf16>, vector<8x32xf32> -> vector<8x32xf32>
    %231 = arith.addf %229, %230 : vector<8x32xf32>
    %232 = arith.negf %231 : vector<8x32xf32>
    %233 = math.exp %232 : vector<8x32xf32>
    %cst_55 = arith.constant 1.000000e+00 : f32
    %234 = vector.broadcast %cst_55 : f32 to vector<8x32xf32>
    %235 = arith.addf %234, %233 : vector<8x32xf32>
    %236 = arith.divf %234, %235 : vector<8x32xf32>
    %237 = vector.extract_strided_slice %8 {offsets = [40, 0], sizes = [8, 32], strides = [1, 1]} : vector<64x32xf32> to vector<8x32xf32>
    %cst_56 = arith.constant dense<0.000000e+00> : vector<8x32xf32>
    %238 = tpu.matmul %228, %12, %cst_56 {dimension_numbers = #tpu.dot_dimension_numbers<[1], [0], [0], [1], [0, 0, 1, 1], [], []>} : vector<8x32xbf16>, vector<32x32xbf16>, vector<8x32xf32> -> vector<8x32xf32>
    %239 = arith.addf %237, %238 : vector<8x32xf32>
    %240 = arith.negf %239 : vector<8x32xf32>
    %241 = math.exp %240 : vector<8x32xf32>
    %cst_57 = arith.constant 1.000000e+00 : f32
    %242 = vector.broadcast %cst_57 : f32 to vector<8x32xf32>
    %243 = arith.addf %242, %241 : vector<8x32xf32>
    %244 = arith.divf %242, %243 : vector<8x32xf32>
    %245 = vector.extract_strided_slice %9 {offsets = [40, 0], sizes = [8, 32], strides = [1, 1]} : vector<64x32xf32> to vector<8x32xf32>
    %cst_58 = arith.constant dense<0.000000e+00> : vector<8x32xf32>
    %246 = tpu.matmul %228, %13, %cst_58 {dimension_numbers = #tpu.dot_dimension_numbers<[1], [0], [0], [1], [0, 0, 1, 1], [], []>} : vector<8x32xbf16>, vector<32x32xbf16>, vector<8x32xf32> -> vector<8x32xf32>
    %247 = arith.addf %245, %246 : vector<8x32xf32>
    %248 = math.tanh %247 : vector<8x32xf32>
    %249 = vector.extract_strided_slice %10 {offsets = [40, 0], sizes = [8, 32], strides = [1, 1]} : vector<64x32xf32> to vector<8x32xf32>
    %cst_59 = arith.constant dense<0.000000e+00> : vector<8x32xf32>
    %250 = tpu.matmul %228, %14, %cst_59 {dimension_numbers = #tpu.dot_dimension_numbers<[1], [0], [0], [1], [0, 0, 1, 1], [], []>} : vector<8x32xbf16>, vector<32x32xbf16>, vector<8x32xf32> -> vector<8x32xf32>
    %251 = arith.addf %249, %250 : vector<8x32xf32>
    %252 = arith.negf %251 : vector<8x32xf32>
    %253 = math.exp %252 : vector<8x32xf32>
    %cst_60 = arith.constant 1.000000e+00 : f32
    %254 = vector.broadcast %cst_60 : f32 to vector<8x32xf32>
    %255 = arith.addf %254, %253 : vector<8x32xf32>
    %256 = arith.divf %254, %255 : vector<8x32xf32>
    %257 = arith.mulf %244, %224 : vector<8x32xf32>
    %258 = arith.mulf %236, %248 : vector<8x32xf32>
    %259 = arith.addf %257, %258 : vector<8x32xf32>
    %260 = math.tanh %259 : vector<8x32xf32>
    %261 = arith.mulf %256, %260 : vector<8x32xf32>
    %c5_i32 = arith.constant 5 : i32
    %262 = vector.broadcast %c5_i32 : i32 to vector<8x1xi32>
    %263 = arith.cmpi sgt, %15, %262 : vector<8x1xi32>
    %264 = vector.shape_cast %263 : vector<8x1xi1> to vector<8x1xi1>
    %265 = vector.broadcast %264 : vector<8x1xi1> to vector<8x32xi1>
    %266 = arith.select %265, %259, %224 : vector<8x32xi1>, vector<8x32xf32>
    %267 = vector.shape_cast %263 : vector<8x1xi1> to vector<8x1xi1>
    %268 = vector.broadcast %267 : vector<8x1xi1> to vector<8x32xi1>
    %269 = arith.select %268, %261, %227 : vector<8x32xi1>, vector<8x32xf32>
    %270 = arith.truncf %269 : vector<8x32xf32> to vector<8x32xbf16>
    %271 = vector.extract_strided_slice %7 {offsets = [48, 0], sizes = [8, 32], strides = [1, 1]} : vector<64x32xf32> to vector<8x32xf32>
    %cst_61 = arith.constant dense<0.000000e+00> : vector<8x32xf32>
    %272 = tpu.matmul %270, %11, %cst_61 {dimension_numbers = #tpu.dot_dimension_numbers<[1], [0], [0], [1], [0, 0, 1, 1], [], []>} : vector<8x32xbf16>, vector<32x32xbf16>, vector<8x32xf32> -> vector<8x32xf32>
    %273 = arith.addf %271, %272 : vector<8x32xf32>
    %274 = arith.negf %273 : vector<8x32xf32>
    %275 = math.exp %274 : vector<8x32xf32>
    %cst_62 = arith.constant 1.000000e+00 : f32
    %276 = vector.broadcast %cst_62 : f32 to vector<8x32xf32>
    %277 = arith.addf %276, %275 : vector<8x32xf32>
    %278 = arith.divf %276, %277 : vector<8x32xf32>
    %279 = vector.extract_strided_slice %8 {offsets = [48, 0], sizes = [8, 32], strides = [1, 1]} : vector<64x32xf32> to vector<8x32xf32>
    %cst_63 = arith.constant dense<0.000000e+00> : vector<8x32xf32>
    %280 = tpu.matmul %270, %12, %cst_63 {dimension_numbers = #tpu.dot_dimension_numbers<[1], [0], [0], [1], [0, 0, 1, 1], [], []>} : vector<8x32xbf16>, vector<32x32xbf16>, vector<8x32xf32> -> vector<8x32xf32>
    %281 = arith.addf %279, %280 : vector<8x32xf32>
    %282 = arith.negf %281 : vector<8x32xf32>
    %283 = math.exp %282 : vector<8x32xf32>
    %cst_64 = arith.constant 1.000000e+00 : f32
    %284 = vector.broadcast %cst_64 : f32 to vector<8x32xf32>
    %285 = arith.addf %284, %283 : vector<8x32xf32>
    %286 = arith.divf %284, %285 : vector<8x32xf32>
    %287 = vector.extract_strided_slice %9 {offsets = [48, 0], sizes = [8, 32], strides = [1, 1]} : vector<64x32xf32> to vector<8x32xf32>
    %cst_65 = arith.constant dense<0.000000e+00> : vector<8x32xf32>
    %288 = tpu.matmul %270, %13, %cst_65 {dimension_numbers = #tpu.dot_dimension_numbers<[1], [0], [0], [1], [0, 0, 1, 1], [], []>} : vector<8x32xbf16>, vector<32x32xbf16>, vector<8x32xf32> -> vector<8x32xf32>
    %289 = arith.addf %287, %288 : vector<8x32xf32>
    %290 = math.tanh %289 : vector<8x32xf32>
    %291 = vector.extract_strided_slice %10 {offsets = [48, 0], sizes = [8, 32], strides = [1, 1]} : vector<64x32xf32> to vector<8x32xf32>
    %cst_66 = arith.constant dense<0.000000e+00> : vector<8x32xf32>
    %292 = tpu.matmul %270, %14, %cst_66 {dimension_numbers = #tpu.dot_dimension_numbers<[1], [0], [0], [1], [0, 0, 1, 1], [], []>} : vector<8x32xbf16>, vector<32x32xbf16>, vector<8x32xf32> -> vector<8x32xf32>
    %293 = arith.addf %291, %292 : vector<8x32xf32>
    %294 = arith.negf %293 : vector<8x32xf32>
    %295 = math.exp %294 : vector<8x32xf32>
    %cst_67 = arith.constant 1.000000e+00 : f32
    %296 = vector.broadcast %cst_67 : f32 to vector<8x32xf32>
    %297 = arith.addf %296, %295 : vector<8x32xf32>
    %298 = arith.divf %296, %297 : vector<8x32xf32>
    %299 = arith.mulf %286, %266 : vector<8x32xf32>
    %300 = arith.mulf %278, %290 : vector<8x32xf32>
    %301 = arith.addf %299, %300 : vector<8x32xf32>
    %302 = math.tanh %301 : vector<8x32xf32>
    %303 = arith.mulf %298, %302 : vector<8x32xf32>
    %c6_i32 = arith.constant 6 : i32
    %304 = vector.broadcast %c6_i32 : i32 to vector<8x1xi32>
    %305 = arith.cmpi sgt, %15, %304 : vector<8x1xi32>
    %306 = vector.shape_cast %305 : vector<8x1xi1> to vector<8x1xi1>
    %307 = vector.broadcast %306 : vector<8x1xi1> to vector<8x32xi1>
    %308 = arith.select %307, %301, %266 : vector<8x32xi1>, vector<8x32xf32>
    %309 = vector.shape_cast %305 : vector<8x1xi1> to vector<8x1xi1>
    %310 = vector.broadcast %309 : vector<8x1xi1> to vector<8x32xi1>
    %311 = arith.select %310, %303, %269 : vector<8x32xi1>, vector<8x32xf32>
    %312 = arith.truncf %311 : vector<8x32xf32> to vector<8x32xbf16>
    %313 = vector.extract_strided_slice %7 {offsets = [56, 0], sizes = [8, 32], strides = [1, 1]} : vector<64x32xf32> to vector<8x32xf32>
    %cst_68 = arith.constant dense<0.000000e+00> : vector<8x32xf32>
    %314 = tpu.matmul %312, %11, %cst_68 {dimension_numbers = #tpu.dot_dimension_numbers<[1], [0], [0], [1], [0, 0, 1, 1], [], []>} : vector<8x32xbf16>, vector<32x32xbf16>, vector<8x32xf32> -> vector<8x32xf32>
    %315 = arith.addf %313, %314 : vector<8x32xf32>
    %316 = arith.negf %315 : vector<8x32xf32>
    %317 = math.exp %316 : vector<8x32xf32>
    %cst_69 = arith.constant 1.000000e+00 : f32
    %318 = vector.broadcast %cst_69 : f32 to vector<8x32xf32>
    %319 = arith.addf %318, %317 : vector<8x32xf32>
    %320 = arith.divf %318, %319 : vector<8x32xf32>
    %321 = vector.extract_strided_slice %8 {offsets = [56, 0], sizes = [8, 32], strides = [1, 1]} : vector<64x32xf32> to vector<8x32xf32>
    %cst_70 = arith.constant dense<0.000000e+00> : vector<8x32xf32>
    %322 = tpu.matmul %312, %12, %cst_70 {dimension_numbers = #tpu.dot_dimension_numbers<[1], [0], [0], [1], [0, 0, 1, 1], [], []>} : vector<8x32xbf16>, vector<32x32xbf16>, vector<8x32xf32> -> vector<8x32xf32>
    %323 = arith.addf %321, %322 : vector<8x32xf32>
    %324 = arith.negf %323 : vector<8x32xf32>
    %325 = math.exp %324 : vector<8x32xf32>
    %cst_71 = arith.constant 1.000000e+00 : f32
    %326 = vector.broadcast %cst_71 : f32 to vector<8x32xf32>
    %327 = arith.addf %326, %325 : vector<8x32xf32>
    %328 = arith.divf %326, %327 : vector<8x32xf32>
    %329 = vector.extract_strided_slice %9 {offsets = [56, 0], sizes = [8, 32], strides = [1, 1]} : vector<64x32xf32> to vector<8x32xf32>
    %cst_72 = arith.constant dense<0.000000e+00> : vector<8x32xf32>
    %330 = tpu.matmul %312, %13, %cst_72 {dimension_numbers = #tpu.dot_dimension_numbers<[1], [0], [0], [1], [0, 0, 1, 1], [], []>} : vector<8x32xbf16>, vector<32x32xbf16>, vector<8x32xf32> -> vector<8x32xf32>
    %331 = arith.addf %329, %330 : vector<8x32xf32>
    %332 = math.tanh %331 : vector<8x32xf32>
    %333 = vector.extract_strided_slice %10 {offsets = [56, 0], sizes = [8, 32], strides = [1, 1]} : vector<64x32xf32> to vector<8x32xf32>
    %cst_73 = arith.constant dense<0.000000e+00> : vector<8x32xf32>
    %334 = tpu.matmul %312, %14, %cst_73 {dimension_numbers = #tpu.dot_dimension_numbers<[1], [0], [0], [1], [0, 0, 1, 1], [], []>} : vector<8x32xbf16>, vector<32x32xbf16>, vector<8x32xf32> -> vector<8x32xf32>
    %335 = arith.addf %333, %334 : vector<8x32xf32>
    %336 = arith.negf %335 : vector<8x32xf32>
    %337 = math.exp %336 : vector<8x32xf32>
    %cst_74 = arith.constant 1.000000e+00 : f32
    %338 = vector.broadcast %cst_74 : f32 to vector<8x32xf32>
    %339 = arith.addf %338, %337 : vector<8x32xf32>
    %340 = arith.divf %338, %339 : vector<8x32xf32>
    %341 = arith.mulf %328, %308 : vector<8x32xf32>
    %342 = arith.mulf %320, %332 : vector<8x32xf32>
    %343 = arith.addf %341, %342 : vector<8x32xf32>
    %344 = math.tanh %343 : vector<8x32xf32>
    %345 = arith.mulf %340, %344 : vector<8x32xf32>
    %c7_i32 = arith.constant 7 : i32
    %346 = vector.broadcast %c7_i32 : i32 to vector<8x1xi32>
    %347 = arith.cmpi sgt, %15, %346 : vector<8x1xi32>
    %348 = vector.shape_cast %347 : vector<8x1xi1> to vector<8x1xi1>
    %349 = vector.broadcast %348 : vector<8x1xi1> to vector<8x32xi1>
    %350 = arith.select %349, %345, %311 : vector<8x32xi1>, vector<8x32xf32>
    %351 = arith.truncf %350 : vector<8x32xf32> to vector<8x32xbf16>
    %c0_75 = arith.constant 0 : index
    %c0_76 = arith.constant 0 : index
    %352 = vector.load %arg11[%c0_75, %c0_76] : memref<32x32xbf16, #tpu.memory_space<vmem>>, vector<32x32xbf16>
    %cst_77 = arith.constant dense<0.000000e+00> : vector<8x32xf32>
    %353 = tpu.matmul %351, %352, %cst_77 {dimension_numbers = #tpu.dot_dimension_numbers<[1], [0], [0], [1], [0, 0, 1, 1], [], []>} : vector<8x32xbf16>, vector<32x32xbf16>, vector<8x32xf32> -> vector<8x32xf32>
    %c0_78 = arith.constant 0 : index
    %c0_79 = arith.constant 0 : index
    %354 = vector.load %arg12[%c0_78, %c0_79] : memref<1x32xf32, #tpu.memory_space<vmem>>, vector<1x32xf32>
    %355 = vector.broadcast %354 : vector<1x32xf32> to vector<8x32xf32>
    %356 = arith.addf %353, %355 : vector<8x32xf32>
    %c0_80 = arith.constant 0 : index
    %c0_81 = arith.constant 0 : index
    %357 = vector.load %arg10[%c0_80, %c0_81] : memref<8x32xf32, #tpu.memory_space<vmem>>, vector<8x32xf32>
    %358 = arith.truncf %357 : vector<8x32xf32> to vector<8x32xbf16>
    %c0_82 = arith.constant 0 : index
    %c0_83 = arith.constant 0 : index
    %359 = vector.load %arg13[%c0_82, %c0_83] : memref<32x32xbf16, #tpu.memory_space<vmem>>, vector<32x32xbf16>
    %cst_84 = arith.constant dense<0.000000e+00> : vector<8x32xf32>
    %360 = tpu.matmul %358, %359, %cst_84 {dimension_numbers = #tpu.dot_dimension_numbers<[1], [0], [0], [1], [0, 0, 1, 1], [], []>} : vector<8x32xbf16>, vector<32x32xbf16>, vector<8x32xf32> -> vector<8x32xf32>
    %c0_85 = arith.constant 0 : index
    %c0_86 = arith.constant 0 : index
    %361 = vector.load %arg14[%c0_85, %c0_86] : memref<1x32xf32, #tpu.memory_space<vmem>>, vector<1x32xf32>
    %362 = vector.broadcast %361 : vector<1x32xf32> to vector<8x32xf32>
    %363 = arith.addf %360, %362 : vector<8x32xf32>
    %364 = tpu.concatenate %356, %363 in 0 : vector<8x32xf32>, vector<8x32xf32> -> vector<16x32xf32>
    %cst_87 = arith.constant dense<0.000000e+00> : vector<16xf32>
    %365 = vector.multi_reduction <add>, %364, %cst_87 [1] : vector<16x32xf32> to vector<16xf32>
    %366 = vector.shape_cast %365 : vector<16xf32> to vector<16x1xf32>
    %cst_88 = arith.constant 3.200000e+01 : f32
    %367 = vector.broadcast %cst_88 : f32 to vector<16x1xf32>
    %368 = arith.divf %366, %367 : vector<16x1xf32>
    %369 = vector.broadcast %368 : vector<16x1xf32> to vector<16x32xf32>
    %370 = arith.subf %364, %369 : vector<16x32xf32>
    %371 = arith.mulf %370, %370 : vector<16x32xf32>
    %cst_89 = arith.constant dense<0.000000e+00> : vector<16xf32>
    %372 = vector.multi_reduction <add>, %371, %cst_89 [1] : vector<16x32xf32> to vector<16xf32>
    %373 = vector.shape_cast %372 : vector<16xf32> to vector<16x1xf32>
    %cst_90 = arith.constant 3.200000e+01 : f32
    %374 = vector.broadcast %cst_90 : f32 to vector<16x1xf32>
    %375 = arith.divf %373, %374 : vector<16x1xf32>
    %376 = vector.broadcast %368 : vector<16x1xf32> to vector<16x32xf32>
    %377 = arith.subf %364, %376 : vector<16x32xf32>
    %cst_91 = arith.constant 9.99999974E-6 : f32
    %378 = vector.broadcast %cst_91 : f32 to vector<16x1xf32>
    %379 = arith.addf %375, %378 : vector<16x1xf32>
    %380 = math.rsqrt %379 : vector<16x1xf32>
    %381 = vector.broadcast %380 : vector<16x1xf32> to vector<16x32xf32>
    %382 = arith.mulf %377, %381 : vector<16x32xf32>
    %c0_92 = arith.constant 0 : index
    %c0_93 = arith.constant 0 : index
    %383 = vector.load %arg15[%c0_92, %c0_93] : memref<16x32xf32, #tpu.memory_space<vmem>>, vector<16x32xf32>
    %384 = arith.mulf %382, %383 : vector<16x32xf32>
    %c0_94 = arith.constant 0 : index
    %c0_95 = arith.constant 0 : index
    %385 = vector.load %arg16[%c0_94, %c0_95] : memref<16x32xf32, #tpu.memory_space<vmem>>, vector<16x32xf32>
    %386 = arith.addf %384, %385 : vector<16x32xf32>
    %387 = vector.extract_strided_slice %386 {offsets = [0, 0], sizes = [8, 32], strides = [1, 1]} : vector<16x32xf32> to vector<8x32xf32>
    %388 = arith.truncf %387 : vector<8x32xf32> to vector<8x32xbf16>
    %389 = vector.extract_strided_slice %386 {offsets = [8, 0], sizes = [8, 32], strides = [1, 1]} : vector<16x32xf32> to vector<8x32xf32>
    %390 = arith.truncf %389 : vector<8x32xf32> to vector<8x32xbf16>
    %cst_96 = arith.constant dense<0.000000e+00> : vector<8x8xf32>
    %391 = tpu.matmul %388, %390, %cst_96 {dimension_numbers = #tpu.dot_dimension_numbers<[1], [1], [0], [0], [0, 0, 1, 0], [], []>} : vector<8x32xbf16>, vector<8x32xbf16>, vector<8x8xf32> -> vector<8x8xf32>
    %c0_97 = arith.constant 0 : index
    %c0_98 = arith.constant 0 : index
    %392 = memref.load %arg17[%c0_97, %c0_98] : memref<1x1xf32, #tpu.memory_space<smem>>
    %393 = vector.broadcast %392 : f32 to vector<8x8xf32>
    %394 = arith.mulf %391, %393 : vector<8x8xf32>
    %c0_99 = arith.constant 0 : index
    %c0_100 = arith.constant 0 : index
    %395 = vector.load %arg18[%c0_99, %c0_100] : memref<8x8xf32, #tpu.memory_space<vmem>>, vector<8x8xf32>
    tpu.vector_store %arg18[%c0_99, %c0_100], %394 {strides = array<i32>} : memref<8x8xf32, #tpu.memory_space<vmem>>, vector<8x8xf32>,
    return
  }
}

</mosaic_0001>

<llo_original>
// kernel: clip_forward.1
$region0: #{clip_forward.1}
  #allocation0 [shape = 'u32[]', space=smem, size = 0x4, offset = 0x4, fixed_abs, tag = 'smem constant byte address 0x4 - core index']
  #allocation1 [shape = 'u32[144,128]{1,0:T(1,128)}', space=vmem, size = 0x12000, scoped, tag = 'internal scratch']
  #allocation2 [shape = 'f32[1,1]{1,0:T(1,128)S(6)}', space=smem, size = 0x200, scoped, tag = 'scoped memory for clip_forward.1']
  %s0 = inlined_call_operand.vmem [shape: f32[64,16], index: 0, kind: input, shape index: {}]
  %s1 = inlined_call_operand.vmem [shape: s32[8,1], index: 1, kind: input, shape index: {}]
  %s2 = inlined_call_operand.vmem [shape: f32[8,32], index: 2, kind: input, shape index: {}]
  %s3 = inlined_call_operand.vmem [shape: f32[8,32], index: 3, kind: input, shape index: {}]
  %s4 = inlined_call_operand.vmem [shape: bf16[16,128], index: 4, kind: input, shape index: {}]
  %s5 = inlined_call_operand.vmem [shape: bf16[32,32], index: 5, kind: input, shape index: {}]
  %s6 = inlined_call_operand.vmem [shape: bf16[32,32], index: 6, kind: input, shape index: {}]
  %s7 = inlined_call_operand.vmem [shape: bf16[32,32], index: 7, kind: input, shape index: {}]
  %s8 = inlined_call_operand.vmem [shape: bf16[32,32], index: 8, kind: input, shape index: {}]
  %s9 = inlined_call_operand.vmem [shape: f32[1,128], index: 9, kind: input, shape index: {}]
  %s10 = inlined_call_operand.vmem [shape: f32[8,32], index: 10, kind: input, shape index: {}]
  %s11 = inlined_call_operand.vmem [shape: bf16[32,32], index: 11, kind: input, shape index: {}]
  %s12 = inlined_call_operand.vmem [shape: f32[1,32], index: 12, kind: input, shape index: {}]
  %s13 = inlined_call_operand.vmem [shape: bf16[32,32], index: 13, kind: input, shape index: {}]
  %s14 = inlined_call_operand.hbm [shape: f32[1,32], index: 14, kind: input, shape index: {}]
  %s15 = inlined_call_operand.vmem [shape: f32[16,32], index: 15, kind: input, shape index: {}]
  %s16 = inlined_call_operand.vmem [shape: f32[16,32], index: 16, kind: input, shape index: {}]
  %s17 = inlined_call_operand.<no memory space> [shape: f32[1,1], index: 17, kind: input, shape index: {}]
  %s18 = inlined_call_operand.vmem [shape: f32[8,8], index: 18, kind: output, shape index: {}]
  %s19 = sld [smem:[#allocation0]]
  $region86: #{clip_forward.1} parent=0
    _
  %s21 = ssub.s32 1, %s19
  %s22 = scalar_select 0, %s21, %s19
  %23 = sst [smem:[#allocation2]] %s17
  $region1: #{clip_forward.1} parent=0
    #allocation3 [shape = 'u8[512]{0}', space=vmem, size = 0x400, scoped, tag = 'input window, operand 14, single buffered']
    #allocation4 [shape = 's32[1]{0}', space=sflag, size = 0x4, scoped, tag = 'scoped memory for clip_forward.1']
    %24 = vsyncpa [#allocation4], 0
    // Predicated region
    $region2: #{clip_forward.1} parent=1 // pred_check
      _
    $region3: #{clip_forward.1} parent=1 // pred_check_branch
      %26 = sbr.rel (0) target = $region5
    $region4: #{clip_forward.1} parent=1 // pred_region
      _
    $region5: #{clip_forward.1} parent=1 // pred_fallthru
      _
    // Predicated region
    $region6: #{clip_forward.1} parent=1 // pred_check
      _
    $region7: #{clip_forward.1} parent=1 // pred_check_branch
      %28 = sbr.rel (0) target = $region9
    $region8: #{clip_forward.1} parent=1 // pred_region
      _
    $region9: #{clip_forward.1} parent=1 // pred_fallthru
      _
    // Predicated region
    $region10: #{clip_forward.1} parent=1 // pred_check
      _
    $region11: #{clip_forward.1} parent=1 // pred_check_branch
      %30 = sbr.rel (0) target = $region13
    $region12: #{clip_forward.1} parent=1 // pred_region
      _
    $region13: #{clip_forward.1} parent=1 // pred_fallthru
      _
    // Predicated region
    $region14: #{clip_forward.1} parent=1 // pred_check
      _
    $region15: #{clip_forward.1} parent=1 // pred_check_branch
      %32 = sbr.rel (0) target = $region17
    $region16: #{clip_forward.1} parent=1 // pred_region
      _
    $region17: #{clip_forward.1} parent=1 // pred_fallthru
      _
    // Predicated region
    $region18: #{clip_forward.1} parent=1 // pred_check
      _
    $region19: #{clip_forward.1} parent=1 // pred_check_branch
      %34 = sbr.rel (0) target = $region21
    $region20: #{clip_forward.1} parent=1 // pred_region
      _
    $region21: #{clip_forward.1} parent=1 // pred_fallthru
      _
    // Predicated region
    $region22: #{clip_forward.1} parent=1 // pred_check
      _
    $region23: #{clip_forward.1} parent=1 // pred_check_branch
      %36 = sbr.rel (0) target = $region25
    $region24: #{clip_forward.1} parent=1 // pred_region
      _
    $region25: #{clip_forward.1} parent=1 // pred_fallthru
      _
    // Predicated region
    $region26: #{clip_forward.1} parent=1 // pred_check
      _
    $region27: #{clip_forward.1} parent=1 // pred_check_branch
      %38 = sbr.rel (0) target = $region29
    $region28: #{clip_forward.1} parent=1 // pred_region
      _
    $region29: #{clip_forward.1} parent=1 // pred_fallthru
      _
    // Predicated region
    $region30: #{clip_forward.1} parent=1 // pred_check
      _
    $region31: #{clip_forward.1} parent=1 // pred_check_branch
      %40 = sbr.rel (0) target = $region33
    $region32: #{clip_forward.1} parent=1 // pred_region
      _
    $region33: #{clip_forward.1} parent=1 // pred_fallthru
      _
    // Predicated region
    $region34: #{clip_forward.1} parent=1 // pred_check
      _
    $region35: #{clip_forward.1} parent=1 // pred_check_branch
      %42 = sbr.rel (0) target = $region37
    $region36: #{clip_forward.1} parent=1 // pred_region
      _
    $region37: #{clip_forward.1} parent=1 // pred_fallthru
      _
    // Predicated region
    $region38: #{clip_forward.1} parent=1 // pred_check
      _
    $region39: #{clip_forward.1} parent=1 // pred_check_branch
      %44 = sbr.rel (0) target = $region41
    $region40: #{clip_forward.1} parent=1 // pred_region
      _
    $region41: #{clip_forward.1} parent=1 // pred_fallthru
      _
    // Predicated region
    $region42: #{clip_forward.1} parent=1 // pred_check
      _
    $region43: #{clip_forward.1} parent=1 // pred_check_branch
      %46 = sbr.rel (0) target = $region45
    $region44: #{clip_forward.1} parent=1 // pred_region
      _
    $region45: #{clip_forward.1} parent=1 // pred_fallthru
      _
    // Predicated region
    $region46: #{clip_forward.1} parent=1 // pred_check
      _
    $region47: #{clip_forward.1} parent=1 // pred_check_branch
      %48 = sbr.rel (0) target = $region49
    $region48: #{clip_forward.1} parent=1 // pred_region
      _
    $region49: #{clip_forward.1} parent=1 // pred_fallthru
      _
    // Predicated region
    $region50: #{clip_forward.1} parent=1 // pred_check
      _
    $region51: #{clip_forward.1} parent=1 // pred_check_branch
      %50 = sbr.rel (0) target = $region53
    $region52: #{clip_forward.1} parent=1 // pred_region
      _
    $region53: #{clip_forward.1} parent=1 // pred_fallthru
      _
    // Predicated region
    $region54: #{clip_forward.1} parent=1 // pred_check
      _
    $region55: #{clip_forward.1} parent=1 // pred_check_branch
      %52 = sbr.rel (0) target = $region57
    $region56: #{clip_forward.1} parent=1 // pred_region
      _
    $region57: #{clip_forward.1} parent=1 // pred_fallthru
      _
    // Predicated region
    $region58: #{clip_forward.1} parent=1 // pred_check
      _
    $region59: #{clip_forward.1} parent=1 // pred_check_branch
      %54 = sbr.rel (0) target = $region61
    $region60: #{clip_forward.1} parent=1 // pred_region
      %s56 = ssub.s32 16, 16
      %57 = vsyncadd [#allocation4], %s56
      %s59 = sshll.u32 [#allocation3], 4
      %s60 = int_to_ptr.vmem [resolvable:$true] %s59
      %62 = dma.hbm_to_vmem [thread:$0]  %s14, 16, %s60, [#allocation4]
    $region61: #{clip_forward.1} parent=1 // pred_fallthru
      _
    // Predicated region
    $region62: #{clip_forward.1} parent=1 // pred_check
      _
    $region63: #{clip_forward.1} parent=1 // pred_check_branch
      %64 = sbr.rel (0) target = $region65
    $region64: #{clip_forward.1} parent=1 // pred_region
      _
    $region65: #{clip_forward.1} parent=1 // pred_fallthru
      _
    // Predicated region
    $region66: #{clip_forward.1} parent=1 // pred_check
      _
    $region67: #{clip_forward.1} parent=1 // pred_check_branch
      %66 = sbr.rel (0) target = $region69
    $region68: #{clip_forward.1} parent=1 // pred_region
      _
    $region69: #{clip_forward.1} parent=1 // pred_fallthru
      _
    // Predicated region
    $region70: #{clip_forward.1} parent=1 // pred_check
      _
    $region71: #{clip_forward.1} parent=1 // pred_check_branch
      %68 = sbr.rel (0) target = $region73
    $region72: #{clip_forward.1} parent=1 // pred_region
      _
    $region73: #{clip_forward.1} parent=1 // pred_fallthru
      _
    // Predicated region
    $region74: #{clip_forward.1} parent=1 // pred_check
      _
    $region75: #{clip_forward.1} parent=1 // pred_check_branch
      %70 = sbr.rel (0) target = $region77
    $region76: #{clip_forward.1} parent=1 // pred_region
      %71 = dma.done [#allocation4], 16
    $region77: #{clip_forward.1} parent=1 // pred_fallthru
      _
    %v73 = vld [vmem:[%s0] sm:$0xff]
    %v74 = vld [vmem:[%s0 + $0x8] sm:$0xff]
    %v75 = vld [vmem:[%s0 + $0x10] sm:$0xff]
    %v76 = vld [vmem:[%s0 + $0x18] sm:$0xff]
    %v77 = vld [vmem:[%s0 + $0x20] sm:$0xff]
    %v78 = vld [vmem:[%s0 + $0x28] sm:$0xff]
    %v79 = vld [vmem:[%s0 + $0x30] sm:$0xff]
    %v80 = vld [vmem:[%s0 + $0x38] sm:$0xff]
    %v81 = vpack.c.bf16 %v74, %v73
    %v82 = vpack.c.bf16 %v76, %v75
    %v83 = vpack.c.bf16 %v78, %v77
    %v84 = vpack.c.bf16 %v80, %v79
    %v85 = vld [vmem:[%s4] sm:$0xf]
    %v86 = vld [vmem:[%s4 + $0x4] sm:$0xf]
    %v87 = vld [vmem:[%s9] sm:$0x1]
    %v89 = vlaneseq
    %v90 = vshrl.u32 %v89, 7
    %v91 = vsub.s32 0, %v90
    %v92 = vrot.slane %v87, %v91
    %v96 = vunpack.c.l.b16 %v85
    %v97 = vunpack.c.l.b16 %v86
    %v98 = vpack.c.b16 %v97, %v96
    %vm100 = vcmask 130048
    %v102 = vsel %vm100, %v81, 0
    %v105 = vsel %vm100, %v82, 0
    %v108 = vsel %vm100, %v83, 0
    %v111 = vsel %vm100, %v84, 0
    %113 = vmatprep.subr.bf16.mxu0 0
    %114 = vmatpush1.bf16.msra.mxu0 %v98
    %115 = vmatprep.subr.bf16.mxu0 0
    %116 = vmatpush1.bf16.msra.mxu0 0
    %117 = vmatprep.subr.bf16.mxu0 0
    %118 = vmatpush1.bf16.msra.mxu0 0
    %119 = vmatprep.subr.bf16.mxu0 0
    %120 = vmatpush1.bf16.msra.mxu0 0
    %121 = vmatprep.subr.bf16.mxu0 0
    %122 = vmatpush1.bf16.msra.mxu0 0
    %123 = vmatprep.subr.bf16.mxu0 0
    %124 = vmatpush1.bf16.msra.mxu0 0
    %125 = vmatprep.subr.bf16.mxu0 0
    %126 = vmatpush1.bf16.msra.mxu0 0
    %127 = vmatprep.subr.bf16.mxu0 0
    %128 = vmatpush1.bf16.msra.mxu0 0
    %129 = vmatprep.subr.bf16.mxu0 0
    %130 = vmatpush1.bf16.msra.mxu0 0
    %131 = vmatprep.subr.bf16.mxu0 0
    %132 = vmatpush1.bf16.msra.mxu0 0
    %133 = vmatprep.subr.bf16.mxu0 0
    %134 = vmatpush1.bf16.msra.mxu0 0
    %135 = vmatprep.subr.bf16.mxu0 0
    %136 = vmatpush1.bf16.msra.mxu0 0
    %137 = vmatprep.subr.bf16.mxu0 0
    %138 = vmatpush1.bf16.msra.mxu0 0
    %139 = vmatprep.subr.bf16.mxu0 0
    %140 = vmatpush1.bf16.msra.mxu0 0
    %141 = vmatprep.subr.bf16.mxu0 0
    %142 = vmatpush1.bf16.msra.mxu0 0
    %143 = vmatprep.subr.bf16.mxu0 0
    %144 = vmatpush1.bf16.msra.mxu0 0
    %145 = vmatprep.mubr.bf16.mxu0 0
    %146 = vmatmul.mubr.bf16.gmra.mrb[0].mxu0 %v102
    %v147 = vpop.f32.mrb[0].mxu0
    %v148 = vadd.f32 %v92, %v147
    %v149 = vpop.f32.mrb[0].mxu0
    %v150 = vpop.f32.mrb[0].mxu0
    %v151 = vadd.f32 %v92, %v150
    %v152 = vpop.f32.mrb[0].mxu0
    %153 = vmatprep.mubr.bf16.mxu0 0
    %154 = vmatmul.mubr.bf16.gmra.mrb[0].mxu0 %v105
    %v155 = vpop.f32.mrb[0].mxu0
    %v156 = vadd.f32 %v92, %v155
    %v157 = vpop.f32.mrb[0].mxu0
    %v158 = vpop.f32.mrb[0].mxu0
    %v159 = vadd.f32 %v92, %v158
    %v160 = vpop.f32.mrb[0].mxu0
    %161 = vmatprep.mubr.bf16.mxu0 0
    %162 = vmatmul.mubr.bf16.gmra.mrb[0].mxu0 %v108
    %v163 = vpop.f32.mrb[0].mxu0
    %v164 = vadd.f32 %v92, %v163
    %v165 = vpop.f32.mrb[0].mxu0
    %v166 = vpop.f32.mrb[0].mxu0
    %v167 = vadd.f32 %v92, %v166
    %v168 = vpop.f32.mrb[0].mxu0
    %169 = vmatprep.mubr.bf16.mxu0 0
    %170 = vmatmul.mubr.bf16.gmra.mrb[0].mxu0 %v111
    %v171 = vpop.f32.mrb[0].mxu0
    %v172 = vadd.f32 %v92, %v171
    %v173 = vpop.f32.mrb[0].mxu0
    %v174 = vpop.f32.mrb[0].mxu0
    %v175 = vadd.f32 %v92, %v174
    %v176 = vpop.f32.mrb[0].mxu0
    %177 = vdwg.mxu0
    %v178 = vld [vmem:[%s5] sm:$0xf]
    %v179 = vld [vmem:[%s5 + $0x4] sm:$0xf]
    %v180 = vld [vmem:[%s5 + $0x8] sm:$0xf]
    %v181 = vld [vmem:[%s5 + $0xc] sm:$0xf]
    %v182 = vld [vmem:[%s6] sm:$0xf]
    %v183 = vld [vmem:[%s6 + $0x4] sm:$0xf]
    %v184 = vld [vmem:[%s6 + $0x8] sm:$0xf]
    %v185 = vld [vmem:[%s6 + $0xc] sm:$0xf]
    %v186 = vld [vmem:[%s7] sm:$0xf]
    %v187 = vld [vmem:[%s7 + $0x4] sm:$0xf]
    %v188 = vld [vmem:[%s7 + $0x8] sm:$0xf]
    %v189 = vld [vmem:[%s7 + $0xc] sm:$0xf]
    %v190 = vld [vmem:[%s8] sm:$0xf]
    %v191 = vld [vmem:[%s8 + $0x4] sm:$0xf]
    %v192 = vld [vmem:[%s8 + $0x8] sm:$0xf]
    %v193 = vld [vmem:[%s8 + $0xc] sm:$0xf]
    %v194 = vld [vmem:[%s1] sm:$0xff]
    %v195 = vld [vmem:[%s2] sm:$0xff]
    %v196 = vld [vmem:[%s3] sm:$0xff]
    %v197 = vpack.c.bf16 %v195, %v195
    %v202 = vunpack.c.l.b16 %v178
    %v203 = vunpack.c.l.b16 %v179
    %v204 = vunpack.c.l.b16 %v180
    %v205 = vunpack.c.l.b16 %v181
    %v206 = vpack.c.b16 %v203, %v202
    %v207 = vpack.c.b16 %v205, %v204
    %vm210 = vcmask 261120
    %v212 = vsel %vm210, %v197, 0
    %214 = vmatprep.subr.bf16.mxu0 0
    %215 = vmatpush1.bf16.msra.mxu0 %v206
    %216 = vmatprep.subr.bf16.mxu0 0
    %217 = vmatpush1.bf16.msra.mxu0 %v207
    %218 = vmatprep.subr.bf16.mxu0 0
    %219 = vmatpush1.bf16.msra.mxu0 0
    %220 = vmatprep.subr.bf16.mxu0 0
    %221 = vmatpush1.bf16.msra.mxu0 0
    %222 = vmatprep.subr.bf16.mxu0 0
    %223 = vmatpush1.bf16.msra.mxu0 0
    %224 = vmatprep.subr.bf16.mxu0 0
    %225 = vmatpush1.bf16.msra.mxu0 0
    %226 = vmatprep.subr.bf16.mxu0 0
    %227 = vmatpush1.bf16.msra.mxu0 0
    %228 = vmatprep.subr.bf16.mxu0 0
    %229 = vmatpush1.bf16.msra.mxu0 0
    %230 = vmatprep.subr.bf16.mxu0 0
    %231 = vmatpush1.bf16.msra.mxu0 0
    %232 = vmatprep.subr.bf16.mxu0 0
    %233 = vmatpush1.bf16.msra.mxu0 0
    %234 = vmatprep.subr.bf16.mxu0 0
    %235 = vmatpush1.bf16.msra.mxu0 0
    %236 = vmatprep.subr.bf16.mxu0 0
    %237 = vmatpush1.bf16.msra.mxu0 0
    %238 = vmatprep.subr.bf16.mxu0 0
    %239 = vmatpush1.bf16.msra.mxu0 0
    %240 = vmatprep.subr.bf16.mxu0 0
    %241 = vmatpush1.bf16.msra.mxu0 0
    %242 = vmatprep.subr.bf16.mxu0 0
    %243 = vmatpush1.bf16.msra.mxu0 0
    %244 = vmatprep.subr.bf16.mxu0 0
    %245 = vmatpush1.bf16.msra.mxu0 0
    %246 = vmatprep.mubr.bf16.mxu0 0
    %247 = vmatmul.mubr.bf16.gmra.mrb[0].mxu0 %v212
    %v248 = vpop.f32.mrb[0].mxu0
    %v249 = vadd.f32 0.0, %v248
    %v250 = vpop.f32.mrb[0].mxu0
    %v251 = vpop.f32.mrb[0].mxu0
    %v252 = vpop.f32.mrb[0].mxu0
    %253 = vdwg.mxu0
    %v254 = vadd.f32 %v148, %v249
    %v255 = vxor.u32 %v254, 2147483648
    %v256 = vmul.f32 %v255, 1.442695
    %v257 = vpow.pop %v256
    %v258 = vadd.f32 %v257, 1.0
    %v259 = vrcp.pop %v258
    %v260 = vmul.f32 1.0, %v259
    %v265 = vunpack.c.l.b16 %v182
    %v266 = vunpack.c.l.b16 %v183
    %v267 = vunpack.c.l.b16 %v184
    %v268 = vunpack.c.l.b16 %v185
    %v269 = vpack.c.b16 %v266, %v265
    %v270 = vpack.c.b16 %v268, %v267
    %273 = vmatprep.subr.bf16.mxu0 0
    %274 = vmatpush1.bf16.msra.mxu0 %v269
    %275 = vmatprep.subr.bf16.mxu0 0
    %276 = vmatpush1.bf16.msra.mxu0 %v270
    %277 = vmatprep.subr.bf16.mxu0 0
    %278 = vmatpush1.bf16.msra.mxu0 0
    %279 = vmatprep.subr.bf16.mxu0 0
    %280 = vmatpush1.bf16.msra.mxu0 0
    %281 = vmatprep.subr.bf16.mxu0 0
    %282 = vmatpush1.bf16.msra.mxu0 0
    %283 = vmatprep.subr.bf16.mxu0 0
    %284 = vmatpush1.bf16.msra.mxu0 0
    %285 = vmatprep.subr.bf16.mxu0 0
    %286 = vmatpush1.bf16.msra.mxu0 0
    %287 = vmatprep.subr.bf16.mxu0 0
    %288 = vmatpush1.bf16.msra.mxu0 0
    %289 = vmatprep.subr.bf16.mxu0 0
    %290 = vmatpush1.bf16.msra.mxu0 0
    %291 = vmatprep.subr.bf16.mxu0 0
    %292 = vmatpush1.bf16.msra.mxu0 0
    %293 = vmatprep.subr.bf16.mxu0 0
    %294 = vmatpush1.bf16.msra.mxu0 0
    %295 = vmatprep.subr.bf16.mxu0 0
    %296 = vmatpush1.bf16.msra.mxu0 0
    %297 = vmatprep.subr.bf16.mxu0 0
    %298 = vmatpush1.bf16.msra.mxu0 0
    %299 = vmatprep.subr.bf16.mxu0 0
    %300 = vmatpush1.bf16.msra.mxu0 0
    %301 = vmatprep.subr.bf16.mxu0 0
    %302 = vmatpush1.bf16.msra.mxu0 0
    %303 = vmatprep.subr.bf16.mxu0 0
    %304 = vmatpush1.bf16.msra.mxu0 0
    %305 = vmatprep.mubr.bf16.mxu0 0
    %306 = vmatmul.mubr.bf16.gmra.mrb[0].mxu0 %v212
    %v307 = vpop.f32.mrb[0].mxu0
    %v308 = vadd.f32 0.0, %v307
    %v309 = vpop.f32.mrb[0].mxu0
    %v310 = vpop.f32.mrb[0].mxu0
    %v311 = vpop.f32.mrb[0].mxu0
    %312 = vdwg.mxu0
    %314 = vrot.lane.b32.xlu0 %v308, 32
    %v315 = vpop.permute.xlu0 %314
    %v317 = vadd.f32 %v148, %v315
    %v318 = vxor.u32 %v317, 2147483648
    %v319 = vmul.f32 %v318, 1.442695
    %v320 = vpow.pop %v319
    %v321 = vadd.f32 %v320, 1.0
    %v322 = vrcp.pop %v321
    %v323 = vmul.f32 1.0, %v322
    %v328 = vunpack.c.l.b16 %v186
    %v329 = vunpack.c.l.b16 %v187
    %v330 = vunpack.c.l.b16 %v188
    %v331 = vunpack.c.l.b16 %v189
    %v332 = vpack.c.b16 %v329, %v328
    %v333 = vpack.c.b16 %v331, %v330
    %336 = vmatprep.subr.bf16.mxu0 0
    %337 = vmatpush1.bf16.msra.mxu0 %v332
    %338 = vmatprep.subr.bf16.mxu0 0
    %339 = vmatpush1.bf16.msra.mxu0 %v333
    %340 = vmatprep.subr.bf16.mxu0 0
    %341 = vmatpush1.bf16.msra.mxu0 0
    %342 = vmatprep.subr.bf16.mxu0 0
    %343 = vmatpush1.bf16.msra.mxu0 0
    %344 = vmatprep.subr.bf16.mxu0 0
    %345 = vmatpush1.bf16.msra.mxu0 0
    %346 = vmatprep.subr.bf16.mxu0 0
    %347 = vmatpush1.bf16.msra.mxu0 0
    %348 = vmatprep.subr.bf16.mxu0 0
    %349 = vmatpush1.bf16.msra.mxu0 0
    %350 = vmatprep.subr.bf16.mxu0 0
    %351 = vmatpush1.bf16.msra.mxu0 0
    %352 = vmatprep.subr.bf16.mxu0 0
    %353 = vmatpush1.bf16.msra.mxu0 0
    %354 = vmatprep.subr.bf16.mxu0 0
    %355 = vmatpush1.bf16.msra.mxu0 0
    %356 = vmatprep.subr.bf16.mxu0 0
    %357 = vmatpush1.bf16.msra.mxu0 0
    %358 = vmatprep.subr.bf16.mxu0 0
    %359 = vmatpush1.bf16.msra.mxu0 0
    %360 = vmatprep.subr.bf16.mxu0 0
    %361 = vmatpush1.bf16.msra.mxu0 0
    %362 = vmatprep.subr.bf16.mxu0 0
    %363 = vmatpush1.bf16.msra.mxu0 0
    %364 = vmatprep.subr.bf16.mxu0 0
    %365 = vmatpush1.bf16.msra.mxu0 0
    %366 = vmatprep.subr.bf16.mxu0 0
    %367 = vmatpush1.bf16.msra.mxu0 0
    %368 = vmatprep.mubr.bf16.mxu0 0
    %369 = vmatmul.mubr.bf16.gmra.mrb[0].mxu0 %v212
    %v370 = vpop.f32.mrb[0].mxu0
    %v371 = vadd.f32 0.0, %v370
    %v372 = vpop.f32.mrb[0].mxu0
    %v373 = vpop.f32.mrb[0].mxu0
    %v374 = vpop.f32.mrb[0].mxu0
    %375 = vdwg.mxu0
    %377 = vrot.lane.b32.xlu0 %v371, 64
    %v378 = vpop.permute.xlu0 %377
    %v380 = vadd.f32 %v148, %v378
    %v381 = vtanh.pop %v380
    %v386 = vunpack.c.l.b16 %v190
    %v387 = vunpack.c.l.b16 %v191
    %v388 = vunpack.c.l.b16 %v192
    %v389 = vunpack.c.l.b16 %v193
    %v390 = vpack.c.b16 %v387, %v386
    %v391 = vpack.c.b16 %v389, %v388
    %394 = vmatprep.subr.bf16.mxu0 0
    %395 = vmatpush1.bf16.msra.mxu0 %v390
    %396 = vmatprep.subr.bf16.mxu0 0
    %397 = vmatpush1.bf16.msra.mxu0 %v391
    %398 = vmatprep.subr.bf16.mxu0 0
    %399 = vmatpush1.bf16.msra.mxu0 0
    %400 = vmatprep.subr.bf16.mxu0 0
    %401 = vmatpush1.bf16.msra.mxu0 0
    %402 = vmatprep.subr.bf16.mxu0 0
    %403 = vmatpush1.bf16.msra.mxu0 0
    %404 = vmatprep.subr.bf16.mxu0 0
    %405 = vmatpush1.bf16.msra.mxu0 0
    %406 = vmatprep.subr.bf16.mxu0 0
    %407 = vmatpush1.bf16.msra.mxu0 0
    %408 = vmatprep.subr.bf16.mxu0 0
    %409 = vmatpush1.bf16.msra.mxu0 0
    %410 = vmatprep.subr.bf16.mxu0 0
    %411 = vmatpush1.bf16.msra.mxu0 0
    %412 = vmatprep.subr.bf16.mxu0 0
    %413 = vmatpush1.bf16.msra.mxu0 0
    %414 = vmatprep.subr.bf16.mxu0 0
    %415 = vmatpush1.bf16.msra.mxu0 0
    %416 = vmatprep.subr.bf16.mxu0 0
    %417 = vmatpush1.bf16.msra.mxu0 0
    %418 = vmatprep.subr.bf16.mxu0 0
    %419 = vmatpush1.bf16.msra.mxu0 0
    %420 = vmatprep.subr.bf16.mxu0 0
    %421 = vmatpush1.bf16.msra.mxu0 0
    %422 = vmatprep.subr.bf16.mxu0 0
    %423 = vmatpush1.bf16.msra.mxu0 0
    %424 = vmatprep.subr.bf16.mxu0 0
    %425 = vmatpush1.bf16.msra.mxu0 0
    %426 = vmatprep.mubr.bf16.mxu0 0
    %427 = vmatmul.mubr.bf16.gmra.mrb[0].mxu0 %v212
    %v428 = vpop.f32.mrb[0].mxu0
    %v429 = vadd.f32 0.0, %v428
    %v430 = vpop.f32.mrb[0].mxu0
    %v431 = vpop.f32.mrb[0].mxu0
    %v432 = vpop.f32.mrb[0].mxu0
    %433 = vdwg.mxu0
    %435 = vrot.lane.b32.xlu0 %v429, 96
    %v436 = vpop.permute.xlu0 %435
    %v438 = vadd.f32 %v148, %v436
    %v439 = vxor.u32 %v438, 2147483648
    %v440 = vmul.f32 %v439, 1.442695
    %v441 = vpow.pop %v440
    %v442 = vadd.f32 %v441, 1.0
    %v443 = vrcp.pop %v442
    %v444 = vmul.f32 1.0, %v443
    %446 = vrot.lane.b32.xlu0 %v196, 32
    %v447 = vpop.permute.xlu0 %446
    %v449 = vmul.f32 %v323, %v447
    %451 = vrot.lane.b32.xlu0 %v381, 64
    %v452 = vpop.permute.xlu0 %451
    %v454 = vmul.f32 %v260, %v452
    %456 = vrot.lane.b32.xlu0 %v454, 32
    %v457 = vpop.permute.xlu0 %456
    %v459 = vadd.f32 %v449, %v457
    %v460 = vtanh.pop %v459
    %462 = vrot.lane.b32.xlu0 %v460, 64
    %v463 = vpop.permute.xlu0 %462
    %v465 = vmul.f32 %v444, %v463
    %vm466 = vcmp.gt.s32.totalorder %v194, 0
    %v467 = vsel %vm466, 1, 0
    %468 = vset.pattern.permute.xlu0 0
    %469 = vperm.xlu0 %468, %v467
    %v470 = vpop.permute.xlu0 %469
    %vm471 = vcmp.eq.s32.totalorder %v470, 1
    %v472 = vsel %vm471, %v459, %v447
    %474 = vrot.lane.b32.xlu0 %v195, 96
    %v475 = vpop.permute.xlu0 %474
    %v477 = vsel %vm471, %v465, %v475
    %v478 = vpack.c.bf16 %v477, %v477
    %480 = vrot.lane.b32.xlu0 %v478, 32
    %v481 = vpop.permute.xlu0 %480
    %v483 = vsel %vm210, %v481, 0
    %485 = vmatprep.subr.bf16.mxu0 0
    %486 = vmatpush1.bf16.msra.mxu0 %v206
    %487 = vmatprep.subr.bf16.mxu0 0
    %488 = vmatpush1.bf16.msra.mxu0 %v207
    %489 = vmatprep.subr.bf16.mxu0 0
    %490 = vmatpush1.bf16.msra.mxu0 0
    %491 = vmatprep.subr.bf16.mxu0 0
    %492 = vmatpush1.bf16.msra.mxu0 0
    %493 = vmatprep.subr.bf16.mxu0 0
    %494 = vmatpush1.bf16.msra.mxu0 0
    %495 = vmatprep.subr.bf16.mxu0 0
    %496 = vmatpush1.bf16.msra.mxu0 0
    %497 = vmatprep.subr.bf16.mxu0 0
    %498 = vmatpush1.bf16.msra.mxu0 0
    %499 = vmatprep.subr.bf16.mxu0 0
    %500 = vmatpush1.bf16.msra.mxu0 0
    %501 = vmatprep.subr.bf16.mxu0 0
    %502 = vmatpush1.bf16.msra.mxu0 0
    %503 = vmatprep.subr.bf16.mxu0 0
    %504 = vmatpush1.bf16.msra.mxu0 0
    %505 = vmatprep.subr.bf16.mxu0 0
    %506 = vmatpush1.bf16.msra.mxu0 0
    %507 = vmatprep.subr.bf16.mxu0 0
    %508 = vmatpush1.bf16.msra.mxu0 0
    %509 = vmatprep.subr.bf16.mxu0 0
    %510 = vmatpush1.bf16.msra.mxu0 0
    %511 = vmatprep.subr.bf16.mxu0 0
    %512 = vmatpush1.bf16.msra.mxu0 0
    %513 = vmatprep.subr.bf16.mxu0 0
    %514 = vmatpush1.bf16.msra.mxu0 0
    %515 = vmatprep.subr.bf16.mxu0 0
    %516 = vmatpush1.bf16.msra.mxu0 0
    %517 = vmatprep.mubr.bf16.mxu0 0
    %518 = vmatmul.mubr.bf16.gmra.mrb[0].mxu0 %v483
    %v519 = vpop.f32.mrb[0].mxu0
    %v520 = vadd.f32 0.0, %v519
    %v521 = vpop.f32.mrb[0].mxu0
    %v522 = vpop.f32.mrb[0].mxu0
    %v523 = vpop.f32.mrb[0].mxu0
    %524 = vdwg.mxu0
    %v525 = vadd.f32 %v151, %v520
    %v526 = vxor.u32 %v525, 2147483648
    %v527 = vmul.f32 %v526, 1.442695
    %v528 = vpow.pop %v527
    %v529 = vadd.f32 %v528, 1.0
    %v530 = vrcp.pop %v529
    %v531 = vmul.f32 1.0, %v530
    %532 = vmatprep.subr.bf16.mxu0 0
    %533 = vmatpush1.bf16.msra.mxu0 %v269
    %534 = vmatprep.subr.bf16.mxu0 0
    %535 = vmatpush1.bf16.msra.mxu0 %v270
    %536 = vmatprep.subr.bf16.mxu0 0
    %537 = vmatpush1.bf16.msra.mxu0 0
    %538 = vmatprep.subr.bf16.mxu0 0
    %539 = vmatpush1.bf16.msra.mxu0 0
    %540 = vmatprep.subr.bf16.mxu0 0
    %541 = vmatpush1.bf16.msra.mxu0 0
    %542 = vmatprep.subr.bf16.mxu0 0
    %543 = vmatpush1.bf16.msra.mxu0 0
    %544 = vmatprep.subr.bf16.mxu0 0
    %545 = vmatpush1.bf16.msra.mxu0 0
    %546 = vmatprep.subr.bf16.mxu0 0
    %547 = vmatpush1.bf16.msra.mxu0 0
    %548 = vmatprep.subr.bf16.mxu0 0
    %549 = vmatpush1.bf16.msra.mxu0 0
    %550 = vmatprep.subr.bf16.mxu0 0
    %551 = vmatpush1.bf16.msra.mxu0 0
    %552 = vmatprep.subr.bf16.mxu0 0
    %553 = vmatpush1.bf16.msra.mxu0 0
    %554 = vmatprep.subr.bf16.mxu0 0
    %555 = vmatpush1.bf16.msra.mxu0 0
    %556 = vmatprep.subr.bf16.mxu0 0
    %557 = vmatpush1.bf16.msra.mxu0 0
    %558 = vmatprep.subr.bf16.mxu0 0
    %559 = vmatpush1.bf16.msra.mxu0 0
    %560 = vmatprep.subr.bf16.mxu0 0
    %561 = vmatpush1.bf16.msra.mxu0 0
    %562 = vmatprep.subr.bf16.mxu0 0
    %563 = vmatpush1.bf16.msra.mxu0 0
    %564 = vmatprep.mubr.bf16.mxu0 0
    %565 = vmatmul.mubr.bf16.gmra.mrb[0].mxu0 %v483
    %v566 = vpop.f32.mrb[0].mxu0
    %v567 = vadd.f32 0.0, %v566
    %v568 = vpop.f32.mrb[0].mxu0
    %v569 = vpop.f32.mrb[0].mxu0
    %v570 = vpop.f32.mrb[0].mxu0
    %571 = vdwg.mxu0
    %573 = vrot.lane.b32.xlu0 %v567, 32
    %v574 = vpop.permute.xlu0 %573
    %v576 = vadd.f32 %v151, %v574
    %v577 = vxor.u32 %v576, 2147483648
    %v578 = vmul.f32 %v577, 1.442695
    %v579 = vpow.pop %v578
    %v580 = vadd.f32 %v579, 1.0
    %v581 = vrcp.pop %v580
    %v582 = vmul.f32 1.0, %v581
    %583 = vmatprep.subr.bf16.mxu0 0
    %584 = vmatpush1.bf16.msra.mxu0 %v332
    %585 = vmatprep.subr.bf16.mxu0 0
    %586 = vmatpush1.bf16.msra.mxu0 %v333
    %587 = vmatprep.subr.bf16.mxu0 0
    %588 = vmatpush1.bf16.msra.mxu0 0
    %589 = vmatprep.subr.bf16.mxu0 0
    %590 = vmatpush1.bf16.msra.mxu0 0
    %591 = vmatprep.subr.bf16.mxu0 0
    %592 = vmatpush1.bf16.msra.mxu0 0
    %593 = vmatprep.subr.bf16.mxu0 0
    %594 = vmatpush1.bf16.msra.mxu0 0
    %595 = vmatprep.subr.bf16.mxu0 0
    %596 = vmatpush1.bf16.msra.mxu0 0
    %597 = vmatprep.subr.bf16.mxu0 0
    %598 = vmatpush1.bf16.msra.mxu0 0
    %599 = vmatprep.subr.bf16.mxu0 0
    %600 = vmatpush1.bf16.msra.mxu0 0
    %601 = vmatprep.subr.bf16.mxu0 0
    %602 = vmatpush1.bf16.msra.mxu0 0
    %603 = vmatprep.subr.bf16.mxu0 0
    %604 = vmatpush1.bf16.msra.mxu0 0
    %605 = vmatprep.subr.bf16.mxu0 0
    %606 = vmatpush1.bf16.msra.mxu0 0
    %607 = vmatprep.subr.bf16.mxu0 0
    %608 = vmatpush1.bf16.msra.mxu0 0
    %609 = vmatprep.subr.bf16.mxu0 0
    %610 = vmatpush1.bf16.msra.mxu0 0
    %611 = vmatprep.subr.bf16.mxu0 0
    %612 = vmatpush1.bf16.msra.mxu0 0
    %613 = vmatprep.subr.bf16.mxu0 0
    %614 = vmatpush1.bf16.msra.mxu0 0
    %615 = vmatprep.mubr.bf16.mxu0 0
    %616 = vmatmul.mubr.bf16.gmra.mrb[0].mxu0 %v483
    %v617 = vpop.f32.mrb[0].mxu0
    %v618 = vadd.f32 0.0, %v617
    %v619 = vpop.f32.mrb[0].mxu0
    %v620 = vpop.f32.mrb[0].mxu0
    %v621 = vpop.f32.mrb[0].mxu0
    %622 = vdwg.mxu0
    %624 = vrot.lane.b32.xlu0 %v618, 64
    %v625 = vpop.permute.xlu0 %624
    %v627 = vadd.f32 %v151, %v625
    %v628 = vtanh.pop %v627
    %629 = vmatprep.subr.bf16.mxu0 0
    %630 = vmatpush1.bf16.msra.mxu0 %v390
    %631 = vmatprep.subr.bf16.mxu0 0
    %632 = vmatpush1.bf16.msra.mxu0 %v391
    %633 = vmatprep.subr.bf16.mxu0 0
    %634 = vmatpush1.bf16.msra.mxu0 0
    %635 = vmatprep.subr.bf16.mxu0 0
    %636 = vmatpush1.bf16.msra.mxu0 0
    %637 = vmatprep.subr.bf16.mxu0 0
    %638 = vmatpush1.bf16.msra.mxu0 0
    %639 = vmatprep.subr.bf16.mxu0 0
    %640 = vmatpush1.bf16.msra.mxu0 0
    %641 = vmatprep.subr.bf16.mxu0 0
    %642 = vmatpush1.bf16.msra.mxu0 0
    %643 = vmatprep.subr.bf16.mxu0 0
    %644 = vmatpush1.bf16.msra.mxu0 0
    %645 = vmatprep.subr.bf16.mxu0 0
    %646 = vmatpush1.bf16.msra.mxu0 0
    %647 = vmatprep.subr.bf16.mxu0 0
    %648 = vmatpush1.bf16.msra.mxu0 0
    %649 = vmatprep.subr.bf16.mxu0 0
    %650 = vmatpush1.bf16.msra.mxu0 0
    %651 = vmatprep.subr.bf16.mxu0 0
    %652 = vmatpush1.bf16.msra.mxu0 0
    %653 = vmatprep.subr.bf16.mxu0 0
    %654 = vmatpush1.bf16.msra.mxu0 0
    %655 = vmatprep.subr.bf16.mxu0 0
    %656 = vmatpush1.bf16.msra.mxu0 0
    %657 = vmatprep.subr.bf16.mxu0 0
    %658 = vmatpush1.bf16.msra.mxu0 0
    %659 = vmatprep.subr.bf16.mxu0 0
    %660 = vmatpush1.bf16.msra.mxu0 0
    %661 = vmatprep.mubr.bf16.mxu0 0
    %662 = vmatmul.mubr.bf16.gmra.mrb[0].mxu0 %v483
    %v663 = vpop.f32.mrb[0].mxu0
    %v664 = vadd.f32 0.0, %v663
    %v665 = vpop.f32.mrb[0].mxu0
    %v666 = vpop.f32.mrb[0].mxu0
    %v667 = vpop.f32.mrb[0].mxu0
    %668 = vdwg.mxu0
    %670 = vrot.lane.b32.xlu0 %v664, 96
    %v671 = vpop.permute.xlu0 %670
    %v673 = vadd.f32 %v151, %v671
    %v674 = vxor.u32 %v673, 2147483648
    %v675 = vmul.f32 %v674, 1.442695
    %v676 = vpow.pop %v675
    %v677 = vadd.f32 %v676, 1.0
    %v678 = vrcp.pop %v677
    %v679 = vmul.f32 1.0, %v678
    %v680 = vmul.f32 %v582, %v472
    %682 = vrot.lane.b32.xlu0 %v628, 64
    %v683 = vpop.permute.xlu0 %682
    %v685 = vmul.f32 %v531, %v683
    %687 = vrot.lane.b32.xlu0 %v685, 32
    %v688 = vpop.permute.xlu0 %687
    %v690 = vadd.f32 %v680, %v688
    %v691 = vtanh.pop %v690
    %693 = vrot.lane.b32.xlu0 %v691, 64
    %v694 = vpop.permute.xlu0 %693
    %v696 = vmul.f32 %v679, %v694
    %vm697 = vcmp.gt.s32.totalorder %v194, 1
    %v698 = vsel %vm697, 1, 0
    %699 = vset.pattern.permute.xlu0 0
    %700 = vperm.xlu0 %699, %v698
    %v701 = vpop.permute.xlu0 %700
    %vm702 = vcmp.eq.s32.totalorder %v701, 1
    %v703 = vsel %vm702, %v690, %v472
    %v704 = vsel %vm702, %v696, %v477
    %v705 = vpack.c.bf16 %v704, %v704
    %707 = vrot.lane.b32.xlu0 %v705, 32
    %v708 = vpop.permute.xlu0 %707
    %v710 = vsel %vm210, %v708, 0
    %712 = vmatprep.subr.bf16.mxu0 0
    %713 = vmatpush1.bf16.msra.mxu0 %v206
    %714 = vmatprep.subr.bf16.mxu0 0
    %715 = vmatpush1.bf16.msra.mxu0 %v207
    %716 = vmatprep.subr.bf16.mxu0 0
    %717 = vmatpush1.bf16.msra.mxu0 0
    %718 = vmatprep.subr.bf16.mxu0 0
    %719 = vmatpush1.bf16.msra.mxu0 0
    %720 = vmatprep.subr.bf16.mxu0 0
    %721 = vmatpush1.bf16.msra.mxu0 0
    %722 = vmatprep.subr.bf16.mxu0 0
    %723 = vmatpush1.bf16.msra.mxu0 0
    %724 = vmatprep.subr.bf16.mxu0 0
    %725 = vmatpush1.bf16.msra.mxu0 0
    %726 = vmatprep.subr.bf16.mxu0 0
    %727 = vmatpush1.bf16.msra.mxu0 0
    %728 = vmatprep.subr.bf16.mxu0 0
    %729 = vmatpush1.bf16.msra.mxu0 0
    %730 = vmatprep.subr.bf16.mxu0 0
    %731 = vmatpush1.bf16.msra.mxu0 0
    %732 = vmatprep.subr.bf16.mxu0 0
    %733 = vmatpush1.bf16.msra.mxu0 0
    %734 = vmatprep.subr.bf16.mxu0 0
    %735 = vmatpush1.bf16.msra.mxu0 0
    %736 = vmatprep.subr.bf16.mxu0 0
    %737 = vmatpush1.bf16.msra.mxu0 0
    %738 = vmatprep.subr.bf16.mxu0 0
    %739 = vmatpush1.bf16.msra.mxu0 0
    %740 = vmatprep.subr.bf16.mxu0 0
    %741 = vmatpush1.bf16.msra.mxu0 0
    %742 = vmatprep.subr.bf16.mxu0 0
    %743 = vmatpush1.bf16.msra.mxu0 0
    %744 = vmatprep.mubr.bf16.mxu0 0
    %745 = vmatmul.mubr.bf16.gmra.mrb[0].mxu0 %v710
    %v746 = vpop.f32.mrb[0].mxu0
    %v747 = vadd.f32 0.0, %v746
    %v748 = vpop.f32.mrb[0].mxu0
    %v749 = vpop.f32.mrb[0].mxu0
    %v750 = vpop.f32.mrb[0].mxu0
    %751 = vdwg.mxu0
    %v752 = vadd.f32 %v156, %v747
    %v753 = vxor.u32 %v752, 2147483648
    %v754 = vmul.f32 %v753, 1.442695
    %v755 = vpow.pop %v754
    %v756 = vadd.f32 %v755, 1.0
    %v757 = vrcp.pop %v756
    %v758 = vmul.f32 1.0, %v757
    %759 = vmatprep.subr.bf16.mxu0 0
    %760 = vmatpush1.bf16.msra.mxu0 %v269
    %761 = vmatprep.subr.bf16.mxu0 0
    %762 = vmatpush1.bf16.msra.mxu0 %v270
    %763 = vmatprep.subr.bf16.mxu0 0
    %764 = vmatpush1.bf16.msra.mxu0 0
    %765 = vmatprep.subr.bf16.mxu0 0
    %766 = vmatpush1.bf16.msra.mxu0 0
    %767 = vmatprep.subr.bf16.mxu0 0
    %768 = vmatpush1.bf16.msra.mxu0 0
    %769 = vmatprep.subr.bf16.mxu0 0
    %770 = vmatpush1.bf16.msra.mxu0 0
    %771 = vmatprep.subr.bf16.mxu0 0
    %772 = vmatpush1.bf16.msra.mxu0 0
    %773 = vmatprep.subr.bf16.mxu0 0
    %774 = vmatpush1.bf16.msra.mxu0 0
    %775 = vmatprep.subr.bf16.mxu0 0
    %776 = vmatpush1.bf16.msra.mxu0 0
    %777 = vmatprep.subr.bf16.mxu0 0
    %778 = vmatpush1.bf16.msra.mxu0 0
    %779 = vmatprep.subr.bf16.mxu0 0
    %780 = vmatpush1.bf16.msra.mxu0 0
    %781 = vmatprep.subr.bf16.mxu0 0
    %782 = vmatpush1.bf16.msra.mxu0 0
    %783 = vmatprep.subr.bf16.mxu0 0
    %784 = vmatpush1.bf16.msra.mxu0 0
    %785 = vmatprep.subr.bf16.mxu0 0
    %786 = vmatpush1.bf16.msra.mxu0 0
    %787 = vmatprep.subr.bf16.mxu0 0
    %788 = vmatpush1.bf16.msra.mxu0 0
    %789 = vmatprep.subr.bf16.mxu0 0
    %790 = vmatpush1.bf16.msra.mxu0 0
    %791 = vmatprep.mubr.bf16.mxu0 0
    %792 = vmatmul.mubr.bf16.gmra.mrb[0].mxu0 %v710
    %v793 = vpop.f32.mrb[0].mxu0
    %v794 = vadd.f32 0.0, %v793
    %v795 = vpop.f32.mrb[0].mxu0
    %v796 = vpop.f32.mrb[0].mxu0
    %v797 = vpop.f32.mrb[0].mxu0
    %798 = vdwg.mxu0
    %800 = vrot.lane.b32.xlu0 %v794, 32
    %v801 = vpop.permute.xlu0 %800
    %v803 = vadd.f32 %v156, %v801
    %v804 = vxor.u32 %v803, 2147483648
    %v805 = vmul.f32 %v804, 1.442695
    %v806 = vpow.pop %v805
    %v807 = vadd.f32 %v806, 1.0
    %v808 = vrcp.pop %v807
    %v809 = vmul.f32 1.0, %v808
    %810 = vmatprep.subr.bf16.mxu0 0
    %811 = vmatpush1.bf16.msra.mxu0 %v332
    %812 = vmatprep.subr.bf16.mxu0 0
    %813 = vmatpush1.bf16.msra.mxu0 %v333
    %814 = vmatprep.subr.bf16.mxu0 0
    %815 = vmatpush1.bf16.msra.mxu0 0
    %816 = vmatprep.subr.bf16.mxu0 0
    %817 = vmatpush1.bf16.msra.mxu0 0
    %818 = vmatprep.subr.bf16.mxu0 0
    %819 = vmatpush1.bf16.msra.mxu0 0
    %820 = vmatprep.subr.bf16.mxu0 0
    %821 = vmatpush1.bf16.msra.mxu0 0
    %822 = vmatprep.subr.bf16.mxu0 0
    %823 = vmatpush1.bf16.msra.mxu0 0
    %824 = vmatprep.subr.bf16.mxu0 0
    %825 = vmatpush1.bf16.msra.mxu0 0
    %826 = vmatprep.subr.bf16.mxu0 0
    %827 = vmatpush1.bf16.msra.mxu0 0
    %828 = vmatprep.subr.bf16.mxu0 0
    %829 = vmatpush1.bf16.msra.mxu0 0
    %830 = vmatprep.subr.bf16.mxu0 0
    %831 = vmatpush1.bf16.msra.mxu0 0
    %832 = vmatprep.subr.bf16.mxu0 0
    %833 = vmatpush1.bf16.msra.mxu0 0
    %834 = vmatprep.subr.bf16.mxu0 0
    %835 = vmatpush1.bf16.msra.mxu0 0
    %836 = vmatprep.subr.bf16.mxu0 0
    %837 = vmatpush1.bf16.msra.mxu0 0
    %838 = vmatprep.subr.bf16.mxu0 0
    %839 = vmatpush1.bf16.msra.mxu0 0
    %840 = vmatprep.subr.bf16.mxu0 0
    %841 = vmatpush1.bf16.msra.mxu0 0
    %842 = vmatprep.mubr.bf16.mxu0 0
    %843 = vmatmul.mubr.bf16.gmra.mrb[0].mxu0 %v710
    %v844 = vpop.f32.mrb[0].mxu0
    %v845 = vadd.f32 0.0, %v844
    %v846 = vpop.f32.mrb[0].mxu0
    %v847 = vpop.f32.mrb[0].mxu0
    %v848 = vpop.f32.mrb[0].mxu0
    %849 = vdwg.mxu0
    %851 = vrot.lane.b32.xlu0 %v845, 64
    %v852 = vpop.permute.xlu0 %851
    %v854 = vadd.f32 %v156, %v852
    %v855 = vtanh.pop %v854
    %856 = vmatprep.subr.bf16.mxu0 0
    %857 = vmatpush1.bf16.msra.mxu0 %v390
    %858 = vmatprep.subr.bf16.mxu0 0
    %859 = vmatpush1.bf16.msra.mxu0 %v391
    %860 = vmatprep.subr.bf16.mxu0 0
    %861 = vmatpush1.bf16.msra.mxu0 0
    %862 = vmatprep.subr.bf16.mxu0 0
    %863 = vmatpush1.bf16.msra.mxu0 0
    %864 = vmatprep.subr.bf16.mxu0 0
    %865 = vmatpush1.bf16.msra.mxu0 0
    %866 = vmatprep.subr.bf16.mxu0 0
    %867 = vmatpush1.bf16.msra.mxu0 0
    %868 = vmatprep.subr.bf16.mxu0 0
    %869 = vmatpush1.bf16.msra.mxu0 0
    %870 = vmatprep.subr.bf16.mxu0 0
    %871 = vmatpush1.bf16.msra.mxu0 0
    %872 = vmatprep.subr.bf16.mxu0 0
    %873 = vmatpush1.bf16.msra.mxu0 0
    %874 = vmatprep.subr.bf16.mxu0 0
    %875 = vmatpush1.bf16.msra.mxu0 0
    %876 = vmatprep.subr.bf16.mxu0 0
    %877 = vmatpush1.bf16.msra.mxu0 0
    %878 = vmatprep.subr.bf16.mxu0 0
    %879 = vmatpush1.bf16.msra.mxu0 0
    %880 = vmatprep.subr.bf16.mxu0 0
    %881 = vmatpush1.bf16.msra.mxu0 0
    %882 = vmatprep.subr.bf16.mxu0 0
    %883 = vmatpush1.bf16.msra.mxu0 0
    %884 = vmatprep.subr.bf16.mxu0 0
    %885 = vmatpush1.bf16.msra.mxu0 0
    %886 = vmatprep.subr.bf16.mxu0 0
    %887 = vmatpush1.bf16.msra.mxu0 0
    %888 = vmatprep.mubr.bf16.mxu0 0
    %889 = vmatmul.mubr.bf16.gmra.mrb[0].mxu0 %v710
    %v890 = vpop.f32.mrb[0].mxu0
    %v891 = vadd.f32 0.0, %v890
    %v892 = vpop.f32.mrb[0].mxu0
    %v893 = vpop.f32.mrb[0].mxu0
    %v894 = vpop.f32.mrb[0].mxu0
    %895 = vdwg.mxu0
    %897 = vrot.lane.b32.xlu0 %v891, 96
    %v898 = vpop.permute.xlu0 %897
    %v900 = vadd.f32 %v156, %v898
    %v901 = vxor.u32 %v900, 2147483648
    %v902 = vmul.f32 %v901, 1.442695
    %v903 = vpow.pop %v902
    %v904 = vadd.f32 %v903, 1.0
    %v905 = vrcp.pop %v904
    %v906 = vmul.f32 1.0, %v905
    %v907 = vmul.f32 %v809, %v703
    %909 = vrot.lane.b32.xlu0 %v855, 64
    %v910 = vpop.permute.xlu0 %909
    %v912 = vmul.f32 %v758, %v910
    %914 = vrot.lane.b32.xlu0 %v912, 32
    %v915 = vpop.permute.xlu0 %914
    %v917 = vadd.f32 %v907, %v915
    %v918 = vtanh.pop %v917
    %920 = vrot.lane.b32.xlu0 %v918, 64
    %v921 = vpop.permute.xlu0 %920
    %v923 = vmul.f32 %v906, %v921
    %vm924 = vcmp.gt.s32.totalorder %v194, 2
    %v925 = vsel %vm924, 1, 0
    %926 = vset.pattern.permute.xlu0 0
    %927 = vperm.xlu0 %926, %v925
    %v928 = vpop.permute.xlu0 %927
    %vm929 = vcmp.eq.s32.totalorder %v928, 1
    %v930 = vsel %vm929, %v917, %v703
    %v931 = vsel %vm929, %v923, %v704
    %v932 = vpack.c.bf16 %v931, %v931
    %934 = vrot.lane.b32.xlu0 %v932, 32
    %v935 = vpop.permute.xlu0 %934
    %v937 = vsel %vm210, %v935, 0
    %939 = vmatprep.subr.bf16.mxu0 0
    %940 = vmatpush1.bf16.msra.mxu0 %v206
    %941 = vmatprep.subr.bf16.mxu0 0
    %942 = vmatpush1.bf16.msra.mxu0 %v207
    %943 = vmatprep.subr.bf16.mxu0 0
    %944 = vmatpush1.bf16.msra.mxu0 0
    %945 = vmatprep.subr.bf16.mxu0 0
    %946 = vmatpush1.bf16.msra.mxu0 0
    %947 = vmatprep.subr.bf16.mxu0 0
    %948 = vmatpush1.bf16.msra.mxu0 0
    %949 = vmatprep.subr.bf16.mxu0 0
    %950 = vmatpush1.bf16.msra.mxu0 0
    %951 = vmatprep.subr.bf16.mxu0 0
    %952 = vmatpush1.bf16.msra.mxu0 0
    %953 = vmatprep.subr.bf16.mxu0 0
    %954 = vmatpush1.bf16.msra.mxu0 0
    %955 = vmatprep.subr.bf16.mxu0 0
    %956 = vmatpush1.bf16.msra.mxu0 0
    %957 = vmatprep.subr.bf16.mxu0 0
    %958 = vmatpush1.bf16.msra.mxu0 0
    %959 = vmatprep.subr.bf16.mxu0 0
    %960 = vmatpush1.bf16.msra.mxu0 0
    %961 = vmatprep.subr.bf16.mxu0 0
    %962 = vmatpush1.bf16.msra.mxu0 0
    %963 = vmatprep.subr.bf16.mxu0 0
    %964 = vmatpush1.bf16.msra.mxu0 0
    %965 = vmatprep.subr.bf16.mxu0 0
    %966 = vmatpush1.bf16.msra.mxu0 0
    %967 = vmatprep.subr.bf16.mxu0 0
    %968 = vmatpush1.bf16.msra.mxu0 0
    %969 = vmatprep.subr.bf16.mxu0 0
    %970 = vmatpush1.bf16.msra.mxu0 0
    %971 = vmatprep.mubr.bf16.mxu0 0
    %972 = vmatmul.mubr.bf16.gmra.mrb[0].mxu0 %v937
    %v973 = vpop.f32.mrb[0].mxu0
    %v974 = vadd.f32 0.0, %v973
    %v975 = vpop.f32.mrb[0].mxu0
    %v976 = vpop.f32.mrb[0].mxu0
    %v977 = vpop.f32.mrb[0].mxu0
    %978 = vdwg.mxu0
    %v979 = vadd.f32 %v159, %v974
    %v980 = vxor.u32 %v979, 2147483648
    %v981 = vmul.f32 %v980, 1.442695
    %v982 = vpow.pop %v981
    %v983 = vadd.f32 %v982, 1.0
    %v984 = vrcp.pop %v983
    %v985 = vmul.f32 1.0, %v984
    %986 = vmatprep.subr.bf16.mxu0 0
    %987 = vmatpush1.bf16.msra.mxu0 %v269
    %988 = vmatprep.subr.bf16.mxu0 0
    %989 = vmatpush1.bf16.msra.mxu0 %v270
    %990 = vmatprep.subr.bf16.mxu0 0
    %991 = vmatpush1.bf16.msra.mxu0 0
    %992 = vmatprep.subr.bf16.mxu0 0
    %993 = vmatpush1.bf16.msra.mxu0 0
    %994 = vmatprep.subr.bf16.mxu0 0
    %995 = vmatpush1.bf16.msra.mxu0 0
    %996 = vmatprep.subr.bf16.mxu0 0
    %997 = vmatpush1.bf16.msra.mxu0 0
    %998 = vmatprep.subr.bf16.mxu0 0
    %999 = vmatpush1.bf16.msra.mxu0 0
    %1000 = vmatprep.subr.bf16.mxu0 0
    %1001 = vmatpush1.bf16.msra.mxu0 0
    %1002 = vmatprep.subr.bf16.mxu0 0
    %1003 = vmatpush1.bf16.msra.mxu0 0
    %1004 = vmatprep.subr.bf16.mxu0 0
    %1005 = vmatpush1.bf16.msra.mxu0 0
    %1006 = vmatprep.subr.bf16.mxu0 0
    %1007 = vmatpush1.bf16.msra.mxu0 0
    %1008 = vmatprep.subr.bf16.mxu0 0
    %1009 = vmatpush1.bf16.msra.mxu0 0
    %1010 = vmatprep.subr.bf16.mxu0 0
    %1011 = vmatpush1.bf16.msra.mxu0 0
    %1012 = vmatprep.subr.bf16.mxu0 0
    %1013 = vmatpush1.bf16.msra.mxu0 0
    %1014 = vmatprep.subr.bf16.mxu0 0
    %1015 = vmatpush1.bf16.msra.mxu0 0
    %1016 = vmatprep.subr.bf16.mxu0 0
    %1017 = vmatpush1.bf16.msra.mxu0 0
    %1018 = vmatprep.mubr.bf16.mxu0 0
    %1019 = vmatmul.mubr.bf16.gmra.mrb[0].mxu0 %v937
    %v1020 = vpop.f32.mrb[0].mxu0
    %v1021 = vadd.f32 0.0, %v1020
    %v1022 = vpop.f32.mrb[0].mxu0
    %v1023 = vpop.f32.mrb[0].mxu0
    %v1024 = vpop.f32.mrb[0].mxu0
    %1025 = vdwg.mxu0
    %1027 = vrot.lane.b32.xlu0 %v1021, 32
    %v1028 = vpop.permute.xlu0 %1027
    %v1030 = vadd.f32 %v159, %v1028
    %v1031 = vxor.u32 %v1030, 2147483648
    %v1032 = vmul.f32 %v1031, 1.442695
    %v1033 = vpow.pop %v1032
    %v1034 = vadd.f32 %v1033, 1.0
    %v1035 = vrcp.pop %v1034
    %v1036 = vmul.f32 1.0, %v1035
    %1037 = vmatprep.subr.bf16.mxu0 0
    %1038 = vmatpush1.bf16.msra.mxu0 %v332
    %1039 = vmatprep.subr.bf16.mxu0 0
    %1040 = vmatpush1.bf16.msra.mxu0 %v333
    %1041 = vmatprep.subr.bf16.mxu0 0
    %1042 = vmatpush1.bf16.msra.mxu0 0
    %1043 = vmatprep.subr.bf16.mxu0 0
    %1044 = vmatpush1.bf16.msra.mxu0 0
    %1045 = vmatprep.subr.bf16.mxu0 0
    %1046 = vmatpush1.bf16.msra.mxu0 0
    %1047 = vmatprep.subr.bf16.mxu0 0
    %1048 = vmatpush1.bf16.msra.mxu0 0
    %1049 = vmatprep.subr.bf16.mxu0 0
    %1050 = vmatpush1.bf16.msra.mxu0 0
    %1051 = vmatprep.subr.bf16.mxu0 0
    %1052 = vmatpush1.bf16.msra.mxu0 0
    %1053 = vmatprep.subr.bf16.mxu0 0
    %1054 = vmatpush1.bf16.msra.mxu0 0
    %1055 = vmatprep.subr.bf16.mxu0 0
    %1056 = vmatpush1.bf16.msra.mxu0 0
    %1057 = vmatprep.subr.bf16.mxu0 0
    %1058 = vmatpush1.bf16.msra.mxu0 0
    %1059 = vmatprep.subr.bf16.mxu0 0
    %1060 = vmatpush1.bf16.msra.mxu0 0
    %1061 = vmatprep.subr.bf16.mxu0 0
    %1062 = vmatpush1.bf16.msra.mxu0 0
    %1063 = vmatprep.subr.bf16.mxu0 0
    %1064 = vmatpush1.bf16.msra.mxu0 0
    %1065 = vmatprep.subr.bf16.mxu0 0
    %1066 = vmatpush1.bf16.msra.mxu0 0
    %1067 = vmatprep.subr.bf16.mxu0 0
    %1068 = vmatpush1.bf16.msra.mxu0 0
    %1069 = vmatprep.mubr.bf16.mxu0 0
    %1070 = vmatmul.mubr.bf16.gmra.mrb[0].mxu0 %v937
    %v1071 = vpop.f32.mrb[0].mxu0
    %v1072 = vadd.f32 0.0, %v1071
    %v1073 = vpop.f32.mrb[0].mxu0
    %v1074 = vpop.f32.mrb[0].mxu0
    %v1075 = vpop.f32.mrb[0].mxu0
    %1076 = vdwg.mxu0
    %1078 = vrot.lane.b32.xlu0 %v1072, 64
    %v1079 = vpop.permute.xlu0 %1078
    %v1081 = vadd.f32 %v159, %v1079
    %v1082 = vtanh.pop %v1081
    %1083 = vmatprep.subr.bf16.mxu0 0
    %1084 = vmatpush1.bf16.msra.mxu0 %v390
    %1085 = vmatprep.subr.bf16.mxu0 0
    %1086 = vmatpush1.bf16.msra.mxu0 %v391
    %1087 = vmatprep.subr.bf16.mxu0 0
    %1088 = vmatpush1.bf16.msra.mxu0 0
    %1089 = vmatprep.subr.bf16.mxu0 0
    %1090 = vmatpush1.bf16.msra.mxu0 0
    %1091 = vmatprep.subr.bf16.mxu0 0
    %1092 = vmatpush1.bf16.msra.mxu0 0
    %1093 = vmatprep.subr.bf16.mxu0 0
    %1094 = vmatpush1.bf16.msra.mxu0 0
    %1095 = vmatprep.subr.bf16.mxu0 0
    %1096 = vmatpush1.bf16.msra.mxu0 0
    %1097 = vmatprep.subr.bf16.mxu0 0
    %1098 = vmatpush1.bf16.msra.mxu0 0
    %1099 = vmatprep.subr.bf16.mxu0 0
    %1100 = vmatpush1.bf16.msra.mxu0 0
    %1101 = vmatprep.subr.bf16.mxu0 0
    %1102 = vmatpush1.bf16.msra.mxu0 0
    %1103 = vmatprep.subr.bf16.mxu0 0
    %1104 = vmatpush1.bf16.msra.mxu0 0
    %1105 = vmatprep.subr.bf16.mxu0 0
    %1106 = vmatpush1.bf16.msra.mxu0 0
    %1107 = vmatprep.subr.bf16.mxu0 0
    %1108 = vmatpush1.bf16.msra.mxu0 0
    %1109 = vmatprep.subr.bf16.mxu0 0
    %1110 = vmatpush1.bf16.msra.mxu0 0
    %1111 = vmatprep.subr.bf16.mxu0 0
    %1112 = vmatpush1.bf16.msra.mxu0 0
    %1113 = vmatprep.subr.bf16.mxu0 0
    %1114 = vmatpush1.bf16.msra.mxu0 0
    %1115 = vmatprep.mubr.bf16.mxu0 0
    %1116 = vmatmul.mubr.bf16.gmra.mrb[0].mxu0 %v937
    %v1117 = vpop.f32.mrb[0].mxu0
    %v1118 = vadd.f32 0.0, %v1117
    %v1119 = vpop.f32.mrb[0].mxu0
    %v1120 = vpop.f32.mrb[0].mxu0
    %v1121 = vpop.f32.mrb[0].mxu0
    %1122 = vdwg.mxu0
    %1124 = vrot.lane.b32.xlu0 %v1118, 96
    %v1125 = vpop.permute.xlu0 %1124
    %v1127 = vadd.f32 %v159, %v1125
    %v1128 = vxor.u32 %v1127, 2147483648
    %v1129 = vmul.f32 %v1128, 1.442695
    %v1130 = vpow.pop %v1129
    %v1131 = vadd.f32 %v1130, 1.0
    %v1132 = vrcp.pop %v1131
    %v1133 = vmul.f32 1.0, %v1132
    %v1134 = vmul.f32 %v1036, %v930
    %1136 = vrot.lane.b32.xlu0 %v1082, 64
    %v1137 = vpop.permute.xlu0 %1136
    %v1139 = vmul.f32 %v985, %v1137
    %1141 = vrot.lane.b32.xlu0 %v1139, 32
    %v1142 = vpop.permute.xlu0 %1141
    %v1144 = vadd.f32 %v1134, %v1142
    %v1145 = vtanh.pop %v1144
    %1147 = vrot.lane.b32.xlu0 %v1145, 64
    %v1148 = vpop.permute.xlu0 %1147
    %v1150 = vmul.f32 %v1133, %v1148
    %vm1151 = vcmp.gt.s32.totalorder %v194, 3
    %v1152 = vsel %vm1151, 1, 0
    %1153 = vset.pattern.permute.xlu0 0
    %1154 = vperm.xlu0 %1153, %v1152
    %v1155 = vpop.permute.xlu0 %1154
    %vm1156 = vcmp.eq.s32.totalorder %v1155, 1
    %v1157 = vsel %vm1156, %v1144, %v930
    %v1158 = vsel %vm1156, %v1150, %v931
    %v1159 = vpack.c.bf16 %v1158, %v1158
    %1161 = vrot.lane.b32.xlu0 %v1159, 32
    %v1162 = vpop.permute.xlu0 %1161
    %v1164 = vsel %vm210, %v1162, 0
    %1166 = vmatprep.subr.bf16.mxu0 0
    %1167 = vmatpush1.bf16.msra.mxu0 %v206
    %1168 = vmatprep.subr.bf16.mxu0 0
    %1169 = vmatpush1.bf16.msra.mxu0 %v207
    %1170 = vmatprep.subr.bf16.mxu0 0
    %1171 = vmatpush1.bf16.msra.mxu0 0
    %1172 = vmatprep.subr.bf16.mxu0 0
    %1173 = vmatpush1.bf16.msra.mxu0 0
    %1174 = vmatprep.subr.bf16.mxu0 0
    %1175 = vmatpush1.bf16.msra.mxu0 0
    %1176 = vmatprep.subr.bf16.mxu0 0
    %1177 = vmatpush1.bf16.msra.mxu0 0
    %1178 = vmatprep.subr.bf16.mxu0 0
    %1179 = vmatpush1.bf16.msra.mxu0 0
    %1180 = vmatprep.subr.bf16.mxu0 0
    %1181 = vmatpush1.bf16.msra.mxu0 0
    %1182 = vmatprep.subr.bf16.mxu0 0
    %1183 = vmatpush1.bf16.msra.mxu0 0
    %1184 = vmatprep.subr.bf16.mxu0 0
    %1185 = vmatpush1.bf16.msra.mxu0 0
    %1186 = vmatprep.subr.bf16.mxu0 0
    %1187 = vmatpush1.bf16.msra.mxu0 0
    %1188 = vmatprep.subr.bf16.mxu0 0
    %1189 = vmatpush1.bf16.msra.mxu0 0
    %1190 = vmatprep.subr.bf16.mxu0 0
    %1191 = vmatpush1.bf16.msra.mxu0 0
    %1192 = vmatprep.subr.bf16.mxu0 0
    %1193 = vmatpush1.bf16.msra.mxu0 0
    %1194 = vmatprep.subr.bf16.mxu0 0
    %1195 = vmatpush1.bf16.msra.mxu0 0
    %1196 = vmatprep.subr.bf16.mxu0 0
    %1197 = vmatpush1.bf16.msra.mxu0 0
    %1198 = vmatprep.mubr.bf16.mxu0 0
    %1199 = vmatmul.mubr.bf16.gmra.mrb[0].mxu0 %v1164
    %v1200 = vpop.f32.mrb[0].mxu0
    %v1201 = vadd.f32 0.0, %v1200
    %v1202 = vpop.f32.mrb[0].mxu0
    %v1203 = vpop.f32.mrb[0].mxu0
    %v1204 = vpop.f32.mrb[0].mxu0
    %1205 = vdwg.mxu0
    %v1206 = vadd.f32 %v164, %v1201
    %v1207 = vxor.u32 %v1206, 2147483648
    %v1208 = vmul.f32 %v1207, 1.442695
    %v1209 = vpow.pop %v1208
    %v1210 = vadd.f32 %v1209, 1.0
    %v1211 = vrcp.pop %v1210
    %v1212 = vmul.f32 1.0, %v1211
    %1213 = vmatprep.subr.bf16.mxu0 0
    %1214 = vmatpush1.bf16.msra.mxu0 %v269
    %1215 = vmatprep.subr.bf16.mxu0 0
    %1216 = vmatpush1.bf16.msra.mxu0 %v270
    %1217 = vmatprep.subr.bf16.mxu0 0
    %1218 = vmatpush1.bf16.msra.mxu0 0
    %1219 = vmatprep.subr.bf16.mxu0 0
    %1220 = vmatpush1.bf16.msra.mxu0 0
    %1221 = vmatprep.subr.bf16.mxu0 0
    %1222 = vmatpush1.bf16.msra.mxu0 0
    %1223 = vmatprep.subr.bf16.mxu0 0
    %1224 = vmatpush1.bf16.msra.mxu0 0
    %1225 = vmatprep.subr.bf16.mxu0 0
    %1226 = vmatpush1.bf16.msra.mxu0 0
    %1227 = vmatprep.subr.bf16.mxu0 0
    %1228 = vmatpush1.bf16.msra.mxu0 0
    %1229 = vmatprep.subr.bf16.mxu0 0
    %1230 = vmatpush1.bf16.msra.mxu0 0
    %1231 = vmatprep.subr.bf16.mxu0 0
    %1232 = vmatpush1.bf16.msra.mxu0 0
    %1233 = vmatprep.subr.bf16.mxu0 0
    %1234 = vmatpush1.bf16.msra.mxu0 0
    %1235 = vmatprep.subr.bf16.mxu0 0
    %1236 = vmatpush1.bf16.msra.mxu0 0
    %1237 = vmatprep.subr.bf16.mxu0 0
    %1238 = vmatpush1.bf16.msra.mxu0 0
    %1239 = vmatprep.subr.bf16.mxu0 0
    %1240 = vmatpush1.bf16.msra.mxu0 0
    %1241 = vmatprep.subr.bf16.mxu0 0
    %1242 = vmatpush1.bf16.msra.mxu0 0
    %1243 = vmatprep.subr.bf16.mxu0 0
    %1244 = vmatpush1.bf16.msra.mxu0 0
    %1245 = vmatprep.mubr.bf16.mxu0 0
    %1246 = vmatmul.mubr.bf16.gmra.mrb[0].mxu0 %v1164
    %v1247 = vpop.f32.mrb[0].mxu0
    %v1248 = vadd.f32 0.0, %v1247
    %v1249 = vpop.f32.mrb[0].mxu0
    %v1250 = vpop.f32.mrb[0].mxu0
    %v1251 = vpop.f32.mrb[0].mxu0
    %1252 = vdwg.mxu0
    %1254 = vrot.lane.b32.xlu0 %v1248, 32
    %v1255 = vpop.permute.xlu0 %1254
    %v1257 = vadd.f32 %v164, %v1255
    %v1258 = vxor.u32 %v1257, 2147483648
    %v1259 = vmul.f32 %v1258, 1.442695
    %v1260 = vpow.pop %v1259
    %v1261 = vadd.f32 %v1260, 1.0
    %v1262 = vrcp.pop %v1261
    %v1263 = vmul.f32 1.0, %v1262
    %1264 = vmatprep.subr.bf16.mxu0 0
    %1265 = vmatpush1.bf16.msra.mxu0 %v332
    %1266 = vmatprep.subr.bf16.mxu0 0
    %1267 = vmatpush1.bf16.msra.mxu0 %v333
    %1268 = vmatprep.subr.bf16.mxu0 0
    %1269 = vmatpush1.bf16.msra.mxu0 0
    %1270 = vmatprep.subr.bf16.mxu0 0
    %1271 = vmatpush1.bf16.msra.mxu0 0
    %1272 = vmatprep.subr.bf16.mxu0 0
    %1273 = vmatpush1.bf16.msra.mxu0 0
    %1274 = vmatprep.subr.bf16.mxu0 0
    %1275 = vmatpush1.bf16.msra.mxu0 0
    %1276 = vmatprep.subr.bf16.mxu0 0
    %1277 = vmatpush1.bf16.msra.mxu0 0
    %1278 = vmatprep.subr.bf16.mxu0 0
    %1279 = vmatpush1.bf16.msra.mxu0 0
    %1280 = vmatprep.subr.bf16.mxu0 0
    %1281 = vmatpush1.bf16.msra.mxu0 0
    %1282 = vmatprep.subr.bf16.mxu0 0
    %1283 = vmatpush1.bf16.msra.mxu0 0
    %1284 = vmatprep.subr.bf16.mxu0 0
    %1285 = vmatpush1.bf16.msra.mxu0 0
    %1286 = vmatprep.subr.bf16.mxu0 0
    %1287 = vmatpush1.bf16.msra.mxu0 0
    %1288 = vmatprep.subr.bf16.mxu0 0
    %1289 = vmatpush1.bf16.msra.mxu0 0
    %1290 = vmatprep.subr.bf16.mxu0 0
    %1291 = vmatpush1.bf16.msra.mxu0 0
    %1292 = vmatprep.subr.bf16.mxu0 0
    %1293 = vmatpush1.bf16.msra.mxu0 0
    %1294 = vmatprep.subr.bf16.mxu0 0
    %1295 = vmatpush1.bf16.msra.mxu0 0
    %1296 = vmatprep.mubr.bf16.mxu0 0
    %1297 = vmatmul.mubr.bf16.gmra.mrb[0].mxu0 %v1164
    %v1298 = vpop.f32.mrb[0].mxu0
    %v1299 = vadd.f32 0.0, %v1298
    %v1300 = vpop.f32.mrb[0].mxu0
    %v1301 = vpop.f32.mrb[0].mxu0
    %v1302 = vpop.f32.mrb[0].mxu0
    %1303 = vdwg.mxu0
    %1305 = vrot.lane.b32.xlu0 %v1299, 64
    %v1306 = vpop.permute.xlu0 %1305
    %v1308 = vadd.f32 %v164, %v1306
    %v1309 = vtanh.pop %v1308
    %1310 = vmatprep.subr.bf16.mxu0 0
    %1311 = vmatpush1.bf16.msra.mxu0 %v390
    %1312 = vmatprep.subr.bf16.mxu0 0
    %1313 = vmatpush1.bf16.msra.mxu0 %v391
    %1314 = vmatprep.subr.bf16.mxu0 0
    %1315 = vmatpush1.bf16.msra.mxu0 0
    %1316 = vmatprep.subr.bf16.mxu0 0
    %1317 = vmatpush1.bf16.msra.mxu0 0
    %1318 = vmatprep.subr.bf16.mxu0 0
    %1319 = vmatpush1.bf16.msra.mxu0 0
    %1320 = vmatprep.subr.bf16.mxu0 0
    %1321 = vmatpush1.bf16.msra.mxu0 0
    %1322 = vmatprep.subr.bf16.mxu0 0
    %1323 = vmatpush1.bf16.msra.mxu0 0
    %1324 = vmatprep.subr.bf16.mxu0 0
    %1325 = vmatpush1.bf16.msra.mxu0 0
    %1326 = vmatprep.subr.bf16.mxu0 0
    %1327 = vmatpush1.bf16.msra.mxu0 0
    %1328 = vmatprep.subr.bf16.mxu0 0
    %1329 = vmatpush1.bf16.msra.mxu0 0
    %1330 = vmatprep.subr.bf16.mxu0 0
    %1331 = vmatpush1.bf16.msra.mxu0 0
    %1332 = vmatprep.subr.bf16.mxu0 0
    %1333 = vmatpush1.bf16.msra.mxu0 0
    %1334 = vmatprep.subr.bf16.mxu0 0
    %1335 = vmatpush1.bf16.msra.mxu0 0
    %1336 = vmatprep.subr.bf16.mxu0 0
    %1337 = vmatpush1.bf16.msra.mxu0 0
    %1338 = vmatprep.subr.bf16.mxu0 0
    %1339 = vmatpush1.bf16.msra.mxu0 0
    %1340 = vmatprep.subr.bf16.mxu0 0
    %1341 = vmatpush1.bf16.msra.mxu0 0
    %1342 = vmatprep.mubr.bf16.mxu0 0
    %1343 = vmatmul.mubr.bf16.gmra.mrb[0].mxu0 %v1164
    %v1344 = vpop.f32.mrb[0].mxu0
    %v1345 = vadd.f32 0.0, %v1344
    %v1346 = vpop.f32.mrb[0].mxu0
    %v1347 = vpop.f32.mrb[0].mxu0
    %v1348 = vpop.f32.mrb[0].mxu0
    %1349 = vdwg.mxu0
    %1351 = vrot.lane.b32.xlu0 %v1345, 96
    %v1352 = vpop.permute.xlu0 %1351
    %v1354 = vadd.f32 %v164, %v1352
    %v1355 = vxor.u32 %v1354, 2147483648
    %v1356 = vmul.f32 %v1355, 1.442695
    %v1357 = vpow.pop %v1356
    %v1358 = vadd.f32 %v1357, 1.0
    %v1359 = vrcp.pop %v1358
    %v1360 = vmul.f32 1.0, %v1359
    %v1361 = vmul.f32 %v1263, %v1157
    %1363 = vrot.lane.b32.xlu0 %v1309, 64
    %v1364 = vpop.permute.xlu0 %1363
    %v1366 = vmul.f32 %v1212, %v1364
    %1368 = vrot.lane.b32.xlu0 %v1366, 32
    %v1369 = vpop.permute.xlu0 %1368
    %v1371 = vadd.f32 %v1361, %v1369
    %v1372 = vtanh.pop %v1371
    %1374 = vrot.lane.b32.xlu0 %v1372, 64
    %v1375 = vpop.permute.xlu0 %1374
    %v1377 = vmul.f32 %v1360, %v1375
    %vm1378 = vcmp.gt.s32.totalorder %v194, 4
    %v1379 = vsel %vm1378, 1, 0
    %1380 = vset.pattern.permute.xlu0 0
    %1381 = vperm.xlu0 %1380, %v1379
    %v1382 = vpop.permute.xlu0 %1381
    %vm1383 = vcmp.eq.s32.totalorder %v1382, 1
    %v1384 = vsel %vm1383, %v1371, %v1157
    %v1385 = vsel %vm1383, %v1377, %v1158
    %v1386 = vpack.c.bf16 %v1385, %v1385
    %1388 = vrot.lane.b32.xlu0 %v1386, 32
    %v1389 = vpop.permute.xlu0 %1388
    %v1391 = vsel %vm210, %v1389, 0
    %1393 = vmatprep.subr.bf16.mxu0 0
    %1394 = vmatpush1.bf16.msra.mxu0 %v206
    %1395 = vmatprep.subr.bf16.mxu0 0
    %1396 = vmatpush1.bf16.msra.mxu0 %v207
    %1397 = vmatprep.subr.bf16.mxu0 0
    %1398 = vmatpush1.bf16.msra.mxu0 0
    %1399 = vmatprep.subr.bf16.mxu0 0
    %1400 = vmatpush1.bf16.msra.mxu0 0
    %1401 = vmatprep.subr.bf16.mxu0 0
    %1402 = vmatpush1.bf16.msra.mxu0 0
    %1403 = vmatprep.subr.bf16.mxu0 0
    %1404 = vmatpush1.bf16.msra.mxu0 0
    %1405 = vmatprep.subr.bf16.mxu0 0
    %1406 = vmatpush1.bf16.msra.mxu0 0
    %1407 = vmatprep.subr.bf16.mxu0 0
    %1408 = vmatpush1.bf16.msra.mxu0 0
    %1409 = vmatprep.subr.bf16.mxu0 0
    %1410 = vmatpush1.bf16.msra.mxu0 0
    %1411 = vmatprep.subr.bf16.mxu0 0
    %1412 = vmatpush1.bf16.msra.mxu0 0
    %1413 = vmatprep.subr.bf16.mxu0 0
    %1414 = vmatpush1.bf16.msra.mxu0 0
    %1415 = vmatprep.subr.bf16.mxu0 0
    %1416 = vmatpush1.bf16.msra.mxu0 0
    %1417 = vmatprep.subr.bf16.mxu0 0
    %1418 = vmatpush1.bf16.msra.mxu0 0
    %1419 = vmatprep.subr.bf16.mxu0 0
    %1420 = vmatpush1.bf16.msra.mxu0 0
    %1421 = vmatprep.subr.bf16.mxu0 0
    %1422 = vmatpush1.bf16.msra.mxu0 0
    %1423 = vmatprep.subr.bf16.mxu0 0
    %1424 = vmatpush1.bf16.msra.mxu0 0
    %1425 = vmatprep.mubr.bf16.mxu0 0
    %1426 = vmatmul.mubr.bf16.gmra.mrb[0].mxu0 %v1391
    %v1427 = vpop.f32.mrb[0].mxu0
    %v1428 = vadd.f32 0.0, %v1427
    %v1429 = vpop.f32.mrb[0].mxu0
    %v1430 = vpop.f32.mrb[0].mxu0
    %v1431 = vpop.f32.mrb[0].mxu0
    %1432 = vdwg.mxu0
    %v1433 = vadd.f32 %v167, %v1428
    %v1434 = vxor.u32 %v1433, 2147483648
    %v1435 = vmul.f32 %v1434, 1.442695
    %v1436 = vpow.pop %v1435
    %v1437 = vadd.f32 %v1436, 1.0
    %v1438 = vrcp.pop %v1437
    %v1439 = vmul.f32 1.0, %v1438
    %1440 = vmatprep.subr.bf16.mxu0 0
    %1441 = vmatpush1.bf16.msra.mxu0 %v269
    %1442 = vmatprep.subr.bf16.mxu0 0
    %1443 = vmatpush1.bf16.msra.mxu0 %v270
    %1444 = vmatprep.subr.bf16.mxu0 0
    %1445 = vmatpush1.bf16.msra.mxu0 0
    %1446 = vmatprep.subr.bf16.mxu0 0
    %1447 = vmatpush1.bf16.msra.mxu0 0
    %1448 = vmatprep.subr.bf16.mxu0 0
    %1449 = vmatpush1.bf16.msra.mxu0 0
    %1450 = vmatprep.subr.bf16.mxu0 0
    %1451 = vmatpush1.bf16.msra.mxu0 0
    %1452 = vmatprep.subr.bf16.mxu0 0
    %1453 = vmatpush1.bf16.msra.mxu0 0
    %1454 = vmatprep.subr.bf16.mxu0 0
    %1455 = vmatpush1.bf16.msra.mxu0 0
    %1456 = vmatprep.subr.bf16.mxu0 0
    %1457 = vmatpush1.bf16.msra.mxu0 0
    %1458 = vmatprep.subr.bf16.mxu0 0
    %1459 = vmatpush1.bf16.msra.mxu0 0
    %1460 = vmatprep.subr.bf16.mxu0 0
    %1461 = vmatpush1.bf16.msra.mxu0 0
    %1462 = vmatprep.subr.bf16.mxu0 0
    %1463 = vmatpush1.bf16.msra.mxu0 0
    %1464 = vmatprep.subr.bf16.mxu0 0
    %1465 = vmatpush1.bf16.msra.mxu0 0
    %1466 = vmatprep.subr.bf16.mxu0 0
    %1467 = vmatpush1.bf16.msra.mxu0 0
    %1468 = vmatprep.subr.bf16.mxu0 0
    %1469 = vmatpush1.bf16.msra.mxu0 0
    %1470 = vmatprep.subr.bf16.mxu0 0
    %1471 = vmatpush1.bf16.msra.mxu0 0
    %1472 = vmatprep.mubr.bf16.mxu0 0
    %1473 = vmatmul.mubr.bf16.gmra.mrb[0].mxu0 %v1391
    %v1474 = vpop.f32.mrb[0].mxu0
    %v1475 = vadd.f32 0.0, %v1474
    %v1476 = vpop.f32.mrb[0].mxu0
    %v1477 = vpop.f32.mrb[0].mxu0
    %v1478 = vpop.f32.mrb[0].mxu0
    %1479 = vdwg.mxu0
    %1481 = vrot.lane.b32.xlu0 %v1475, 32
    %v1482 = vpop.permute.xlu0 %1481
    %v1484 = vadd.f32 %v167, %v1482
    %v1485 = vxor.u32 %v1484, 2147483648
    %v1486 = vmul.f32 %v1485, 1.442695
    %v1487 = vpow.pop %v1486
    %v1488 = vadd.f32 %v1487, 1.0
    %v1489 = vrcp.pop %v1488
    %v1490 = vmul.f32 1.0, %v1489
    %1491 = vmatprep.subr.bf16.mxu0 0
    %1492 = vmatpush1.bf16.msra.mxu0 %v332
    %1493 = vmatprep.subr.bf16.mxu0 0
    %1494 = vmatpush1.bf16.msra.mxu0 %v333
    %1495 = vmatprep.subr.bf16.mxu0 0
    %1496 = vmatpush1.bf16.msra.mxu0 0
    %1497 = vmatprep.subr.bf16.mxu0 0
    %1498 = vmatpush1.bf16.msra.mxu0 0
    %1499 = vmatprep.subr.bf16.mxu0 0
    %1500 = vmatpush1.bf16.msra.mxu0 0
    %1501 = vmatprep.subr.bf16.mxu0 0
    %1502 = vmatpush1.bf16.msra.mxu0 0
    %1503 = vmatprep.subr.bf16.mxu0 0
    %1504 = vmatpush1.bf16.msra.mxu0 0
    %1505 = vmatprep.subr.bf16.mxu0 0
    %1506 = vmatpush1.bf16.msra.mxu0 0
    %1507 = vmatprep.subr.bf16.mxu0 0
    %1508 = vmatpush1.bf16.msra.mxu0 0
    %1509 = vmatprep.subr.bf16.mxu0 0
    %1510 = vmatpush1.bf16.msra.mxu0 0
    %1511 = vmatprep.subr.bf16.mxu0 0
    %1512 = vmatpush1.bf16.msra.mxu0 0
    %1513 = vmatprep.subr.bf16.mxu0 0
    %1514 = vmatpush1.bf16.msra.mxu0 0
    %1515 = vmatprep.subr.bf16.mxu0 0
    %1516 = vmatpush1.bf16.msra.mxu0 0
    %1517 = vmatprep.subr.bf16.mxu0 0
    %1518 = vmatpush1.bf16.msra.mxu0 0
    %1519 = vmatprep.subr.bf16.mxu0 0
    %1520 = vmatpush1.bf16.msra.mxu0 0
    %1521 = vmatprep.subr.bf16.mxu0 0
    %1522 = vmatpush1.bf16.msra.mxu0 0
    %1523 = vmatprep.mubr.bf16.mxu0 0
    %1524 = vmatmul.mubr.bf16.gmra.mrb[0].mxu0 %v1391
    %v1525 = vpop.f32.mrb[0].mxu0
    %v1526 = vadd.f32 0.0, %v1525
    %v1527 = vpop.f32.mrb[0].mxu0
    %v1528 = vpop.f32.mrb[0].mxu0
    %v1529 = vpop.f32.mrb[0].mxu0
    %1530 = vdwg.mxu0
    %1532 = vrot.lane.b32.xlu0 %v1526, 64
    %v1533 = vpop.permute.xlu0 %1532
    %v1535 = vadd.f32 %v167, %v1533
    %v1536 = vtanh.pop %v1535
    %1537 = vmatprep.subr.bf16.mxu0 0
    %1538 = vmatpush1.bf16.msra.mxu0 %v390
    %1539 = vmatprep.subr.bf16.mxu0 0
    %1540 = vmatpush1.bf16.msra.mxu0 %v391
    %1541 = vmatprep.subr.bf16.mxu0 0
    %1542 = vmatpush1.bf16.msra.mxu0 0
    %1543 = vmatprep.subr.bf16.mxu0 0
    %1544 = vmatpush1.bf16.msra.mxu0 0
    %1545 = vmatprep.subr.bf16.mxu0 0
    %1546 = vmatpush1.bf16.msra.mxu0 0
    %1547 = vmatprep.subr.bf16.mxu0 0
    %1548 = vmatpush1.bf16.msra.mxu0 0
    %1549 = vmatprep.subr.bf16.mxu0 0
    %1550 = vmatpush1.bf16.msra.mxu0 0
    %1551 = vmatprep.subr.bf16.mxu0 0
    %1552 = vmatpush1.bf16.msra.mxu0 0
    %1553 = vmatprep.subr.bf16.mxu0 0
    %1554 = vmatpush1.bf16.msra.mxu0 0
    %1555 = vmatprep.subr.bf16.mxu0 0
    %1556 = vmatpush1.bf16.msra.mxu0 0
    %1557 = vmatprep.subr.bf16.mxu0 0
    %1558 = vmatpush1.bf16.msra.mxu0 0
    %1559 = vmatprep.subr.bf16.mxu0 0
    %1560 = vmatpush1.bf16.msra.mxu0 0
    %1561 = vmatprep.subr.bf16.mxu0 0
    %1562 = vmatpush1.bf16.msra.mxu0 0
    %1563 = vmatprep.subr.bf16.mxu0 0
    %1564 = vmatpush1.bf16.msra.mxu0 0
    %1565 = vmatprep.subr.bf16.mxu0 0
    %1566 = vmatpush1.bf16.msra.mxu0 0
    %1567 = vmatprep.subr.bf16.mxu0 0
    %1568 = vmatpush1.bf16.msra.mxu0 0
    %1569 = vmatprep.mubr.bf16.mxu0 0
    %1570 = vmatmul.mubr.bf16.gmra.mrb[0].mxu0 %v1391
    %v1571 = vpop.f32.mrb[0].mxu0
    %v1572 = vadd.f32 0.0, %v1571
    %v1573 = vpop.f32.mrb[0].mxu0
    %v1574 = vpop.f32.mrb[0].mxu0
    %v1575 = vpop.f32.mrb[0].mxu0
    %1576 = vdwg.mxu0
    %1578 = vrot.lane.b32.xlu0 %v1572, 96
    %v1579 = vpop.permute.xlu0 %1578
    %v1581 = vadd.f32 %v167, %v1579
    %v1582 = vxor.u32 %v1581, 2147483648
    %v1583 = vmul.f32 %v1582, 1.442695
    %v1584 = vpow.pop %v1583
    %v1585 = vadd.f32 %v1584, 1.0
    %v1586 = vrcp.pop %v1585
    %v1587 = vmul.f32 1.0, %v1586
    %v1588 = vmul.f32 %v1490, %v1384
    %1590 = vrot.lane.b32.xlu0 %v1536, 64
    %v1591 = vpop.permute.xlu0 %1590
    %v1593 = vmul.f32 %v1439, %v1591
    %1595 = vrot.lane.b32.xlu0 %v1593, 32
    %v1596 = vpop.permute.xlu0 %1595
    %v1598 = vadd.f32 %v1588, %v1596
    %v1599 = vtanh.pop %v1598
    %1601 = vrot.lane.b32.xlu0 %v1599, 64
    %v1602 = vpop.permute.xlu0 %1601
    %v1604 = vmul.f32 %v1587, %v1602
    %vm1605 = vcmp.gt.s32.totalorder %v194, 5
    %v1606 = vsel %vm1605, 1, 0
    %1607 = vset.pattern.permute.xlu0 0
    %1608 = vperm.xlu0 %1607, %v1606
    %v1609 = vpop.permute.xlu0 %1608
    %vm1610 = vcmp.eq.s32.totalorder %v1609, 1
    %v1611 = vsel %vm1610, %v1598, %v1384
    %v1612 = vsel %vm1610, %v1604, %v1385
    %v1613 = vpack.c.bf16 %v1612, %v1612
    %1615 = vrot.lane.b32.xlu0 %v1613, 32
    %v1616 = vpop.permute.xlu0 %1615
    %v1618 = vsel %vm210, %v1616, 0
    %1620 = vmatprep.subr.bf16.mxu0 0
    %1621 = vmatpush1.bf16.msra.mxu0 %v206
    %1622 = vmatprep.subr.bf16.mxu0 0
    %1623 = vmatpush1.bf16.msra.mxu0 %v207
    %1624 = vmatprep.subr.bf16.mxu0 0
    %1625 = vmatpush1.bf16.msra.mxu0 0
    %1626 = vmatprep.subr.bf16.mxu0 0
    %1627 = vmatpush1.bf16.msra.mxu0 0
    %1628 = vmatprep.subr.bf16.mxu0 0
    %1629 = vmatpush1.bf16.msra.mxu0 0
    %1630 = vmatprep.subr.bf16.mxu0 0
    %1631 = vmatpush1.bf16.msra.mxu0 0
    %1632 = vmatprep.subr.bf16.mxu0 0
    %1633 = vmatpush1.bf16.msra.mxu0 0
    %1634 = vmatprep.subr.bf16.mxu0 0
    %1635 = vmatpush1.bf16.msra.mxu0 0
    %1636 = vmatprep.subr.bf16.mxu0 0
    %1637 = vmatpush1.bf16.msra.mxu0 0
    %1638 = vmatprep.subr.bf16.mxu0 0
    %1639 = vmatpush1.bf16.msra.mxu0 0
    %1640 = vmatprep.subr.bf16.mxu0 0
    %1641 = vmatpush1.bf16.msra.mxu0 0
    %1642 = vmatprep.subr.bf16.mxu0 0
    %1643 = vmatpush1.bf16.msra.mxu0 0
    %1644 = vmatprep.subr.bf16.mxu0 0
    %1645 = vmatpush1.bf16.msra.mxu0 0
    %1646 = vmatprep.subr.bf16.mxu0 0
    %1647 = vmatpush1.bf16.msra.mxu0 0
    %1648 = vmatprep.subr.bf16.mxu0 0
    %1649 = vmatpush1.bf16.msra.mxu0 0
    %1650 = vmatprep.subr.bf16.mxu0 0
    %1651 = vmatpush1.bf16.msra.mxu0 0
    %1652 = vmatprep.mubr.bf16.mxu0 0
    %1653 = vmatmul.mubr.bf16.gmra.mrb[0].mxu0 %v1618
    %v1654 = vpop.f32.mrb[0].mxu0
    %v1655 = vadd.f32 0.0, %v1654
    %v1656 = vpop.f32.mrb[0].mxu0
    %v1657 = vpop.f32.mrb[0].mxu0
    %v1658 = vpop.f32.mrb[0].mxu0
    %1659 = vdwg.mxu0
    %v1660 = vadd.f32 %v172, %v1655
    %v1661 = vxor.u32 %v1660, 2147483648
    %v1662 = vmul.f32 %v1661, 1.442695
    %v1663 = vpow.pop %v1662
    %v1664 = vadd.f32 %v1663, 1.0
    %v1665 = vrcp.pop %v1664
    %v1666 = vmul.f32 1.0, %v1665
    %1667 = vmatprep.subr.bf16.mxu0 0
    %1668 = vmatpush1.bf16.msra.mxu0 %v269
    %1669 = vmatprep.subr.bf16.mxu0 0
    %1670 = vmatpush1.bf16.msra.mxu0 %v270
    %1671 = vmatprep.subr.bf16.mxu0 0
    %1672 = vmatpush1.bf16.msra.mxu0 0
    %1673 = vmatprep.subr.bf16.mxu0 0
    %1674 = vmatpush1.bf16.msra.mxu0 0
    %1675 = vmatprep.subr.bf16.mxu0 0
    %1676 = vmatpush1.bf16.msra.mxu0 0
    %1677 = vmatprep.subr.bf16.mxu0 0
    %1678 = vmatpush1.bf16.msra.mxu0 0
    %1679 = vmatprep.subr.bf16.mxu0 0
    %1680 = vmatpush1.bf16.msra.mxu0 0
    %1681 = vmatprep.subr.bf16.mxu0 0
    %1682 = vmatpush1.bf16.msra.mxu0 0
    %1683 = vmatprep.subr.bf16.mxu0 0
    %1684 = vmatpush1.bf16.msra.mxu0 0
    %1685 = vmatprep.subr.bf16.mxu0 0
    %1686 = vmatpush1.bf16.msra.mxu0 0
    %1687 = vmatprep.subr.bf16.mxu0 0
    %1688 = vmatpush1.bf16.msra.mxu0 0
    %1689 = vmatprep.subr.bf16.mxu0 0
    %1690 = vmatpush1.bf16.msra.mxu0 0
    %1691 = vmatprep.subr.bf16.mxu0 0
    %1692 = vmatpush1.bf16.msra.mxu0 0
    %1693 = vmatprep.subr.bf16.mxu0 0
    %1694 = vmatpush1.bf16.msra.mxu0 0
    %1695 = vmatprep.subr.bf16.mxu0 0
    %1696 = vmatpush1.bf16.msra.mxu0 0
    %1697 = vmatprep.subr.bf16.mxu0 0
    %1698 = vmatpush1.bf16.msra.mxu0 0
    %1699 = vmatprep.mubr.bf16.mxu0 0
    %1700 = vmatmul.mubr.bf16.gmra.mrb[0].mxu0 %v1618
    %v1701 = vpop.f32.mrb[0].mxu0
    %v1702 = vadd.f32 0.0, %v1701
    %v1703 = vpop.f32.mrb[0].mxu0
    %v1704 = vpop.f32.mrb[0].mxu0
    %v1705 = vpop.f32.mrb[0].mxu0
    %1706 = vdwg.mxu0
    %1708 = vrot.lane.b32.xlu0 %v1702, 32
    %v1709 = vpop.permute.xlu0 %1708
    %v1711 = vadd.f32 %v172, %v1709
    %v1712 = vxor.u32 %v1711, 2147483648
    %v1713 = vmul.f32 %v1712, 1.442695
    %v1714 = vpow.pop %v1713
    %v1715 = vadd.f32 %v1714, 1.0
    %v1716 = vrcp.pop %v1715
    %v1717 = vmul.f32 1.0, %v1716
    %1718 = vmatprep.subr.bf16.mxu0 0
    %1719 = vmatpush1.bf16.msra.mxu0 %v332
    %1720 = vmatprep.subr.bf16.mxu0 0
    %1721 = vmatpush1.bf16.msra.mxu0 %v333
    %1722 = vmatprep.subr.bf16.mxu0 0
    %1723 = vmatpush1.bf16.msra.mxu0 0
    %1724 = vmatprep.subr.bf16.mxu0 0
    %1725 = vmatpush1.bf16.msra.mxu0 0
    %1726 = vmatprep.subr.bf16.mxu0 0
    %1727 = vmatpush1.bf16.msra.mxu0 0
    %1728 = vmatprep.subr.bf16.mxu0 0
    %1729 = vmatpush1.bf16.msra.mxu0 0
    %1730 = vmatprep.subr.bf16.mxu0 0
    %1731 = vmatpush1.bf16.msra.mxu0 0
    %1732 = vmatprep.subr.bf16.mxu0 0
    %1733 = vmatpush1.bf16.msra.mxu0 0
    %1734 = vmatprep.subr.bf16.mxu0 0
    %1735 = vmatpush1.bf16.msra.mxu0 0
    %1736 = vmatprep.subr.bf16.mxu0 0
    %1737 = vmatpush1.bf16.msra.mxu0 0
    %1738 = vmatprep.subr.bf16.mxu0 0
    %1739 = vmatpush1.bf16.msra.mxu0 0
    %1740 = vmatprep.subr.bf16.mxu0 0
    %1741 = vmatpush1.bf16.msra.mxu0 0
    %1742 = vmatprep.subr.bf16.mxu0 0
    %1743 = vmatpush1.bf16.msra.mxu0 0
    %1744 = vmatprep.subr.bf16.mxu0 0
    %1745 = vmatpush1.bf16.msra.mxu0 0
    %1746 = vmatprep.subr.bf16.mxu0 0
    %1747 = vmatpush1.bf16.msra.mxu0 0
    %1748 = vmatprep.subr.bf16.mxu0 0
    %1749 = vmatpush1.bf16.msra.mxu0 0
    %1750 = vmatprep.mubr.bf16.mxu0 0
    %1751 = vmatmul.mubr.bf16.gmra.mrb[0].mxu0 %v1618
    %v1752 = vpop.f32.mrb[0].mxu0
    %v1753 = vadd.f32 0.0, %v1752
    %v1754 = vpop.f32.mrb[0].mxu0
    %v1755 = vpop.f32.mrb[0].mxu0
    %v1756 = vpop.f32.mrb[0].mxu0
    %1757 = vdwg.mxu0
    %1759 = vrot.lane.b32.xlu0 %v1753, 64
    %v1760 = vpop.permute.xlu0 %1759
    %v1762 = vadd.f32 %v172, %v1760
    %v1763 = vtanh.pop %v1762
    %1764 = vmatprep.subr.bf16.mxu0 0
    %1765 = vmatpush1.bf16.msra.mxu0 %v390
    %1766 = vmatprep.subr.bf16.mxu0 0
    %1767 = vmatpush1.bf16.msra.mxu0 %v391
    %1768 = vmatprep.subr.bf16.mxu0 0
    %1769 = vmatpush1.bf16.msra.mxu0 0
    %1770 = vmatprep.subr.bf16.mxu0 0
    %1771 = vmatpush1.bf16.msra.mxu0 0
    %1772 = vmatprep.subr.bf16.mxu0 0
    %1773 = vmatpush1.bf16.msra.mxu0 0
    %1774 = vmatprep.subr.bf16.mxu0 0
    %1775 = vmatpush1.bf16.msra.mxu0 0
    %1776 = vmatprep.subr.bf16.mxu0 0
    %1777 = vmatpush1.bf16.msra.mxu0 0
    %1778 = vmatprep.subr.bf16.mxu0 0
    %1779 = vmatpush1.bf16.msra.mxu0 0
    %1780 = vmatprep.subr.bf16.mxu0 0
    %1781 = vmatpush1.bf16.msra.mxu0 0
    %1782 = vmatprep.subr.bf16.mxu0 0
    %1783 = vmatpush1.bf16.msra.mxu0 0
    %1784 = vmatprep.subr.bf16.mxu0 0
    %1785 = vmatpush1.bf16.msra.mxu0 0
    %1786 = vmatprep.subr.bf16.mxu0 0
    %1787 = vmatpush1.bf16.msra.mxu0 0
    %1788 = vmatprep.subr.bf16.mxu0 0
    %1789 = vmatpush1.bf16.msra.mxu0 0
    %1790 = vmatprep.subr.bf16.mxu0 0
    %1791 = vmatpush1.bf16.msra.mxu0 0
    %1792 = vmatprep.subr.bf16.mxu0 0
    %1793 = vmatpush1.bf16.msra.mxu0 0
    %1794 = vmatprep.subr.bf16.mxu0 0
    %1795 = vmatpush1.bf16.msra.mxu0 0
    %1796 = vmatprep.mubr.bf16.mxu0 0
    %1797 = vmatmul.mubr.bf16.gmra.mrb[0].mxu0 %v1618
    %v1798 = vpop.f32.mrb[0].mxu0
    %v1799 = vadd.f32 0.0, %v1798
    %v1800 = vpop.f32.mrb[0].mxu0
    %v1801 = vpop.f32.mrb[0].mxu0
    %v1802 = vpop.f32.mrb[0].mxu0
    %1803 = vdwg.mxu0
    %1805 = vrot.lane.b32.xlu0 %v1799, 96
    %v1806 = vpop.permute.xlu0 %1805
    %v1808 = vadd.f32 %v172, %v1806
    %v1809 = vxor.u32 %v1808, 2147483648
    %v1810 = vmul.f32 %v1809, 1.442695
    %v1811 = vpow.pop %v1810
    %v1812 = vadd.f32 %v1811, 1.0
    %v1813 = vrcp.pop %v1812
    %v1814 = vmul.f32 1.0, %v1813
    %v1815 = vmul.f32 %v1717, %v1611
    %1817 = vrot.lane.b32.xlu0 %v1763, 64
    %v1818 = vpop.permute.xlu0 %1817
    %v1820 = vmul.f32 %v1666, %v1818
    %1822 = vrot.lane.b32.xlu0 %v1820, 32
    %v1823 = vpop.permute.xlu0 %1822
    %v1825 = vadd.f32 %v1815, %v1823
    %v1826 = vtanh.pop %v1825
    %1828 = vrot.lane.b32.xlu0 %v1826, 64
    %v1829 = vpop.permute.xlu0 %1828
    %v1831 = vmul.f32 %v1814, %v1829
    %vm1832 = vcmp.gt.s32.totalorder %v194, 6
    %v1833 = vsel %vm1832, 1, 0
    %1834 = vset.pattern.permute.xlu0 0
    %1835 = vperm.xlu0 %1834, %v1833
    %v1836 = vpop.permute.xlu0 %1835
    %vm1837 = vcmp.eq.s32.totalorder %v1836, 1
    %v1838 = vsel %vm1837, %v1825, %v1611
    %v1839 = vsel %vm1837, %v1831, %v1612
    %v1840 = vpack.c.bf16 %v1839, %v1839
    %1842 = vrot.lane.b32.xlu0 %v1840, 32
    %v1843 = vpop.permute.xlu0 %1842
    %v1845 = vsel %vm210, %v1843, 0
    %1847 = vmatprep.subr.bf16.mxu0 0
    %1848 = vmatpush1.bf16.msra.mxu0 %v206
    %1849 = vmatprep.subr.bf16.mxu0 0
    %1850 = vmatpush1.bf16.msra.mxu0 %v207
    %1851 = vmatprep.subr.bf16.mxu0 0
    %1852 = vmatpush1.bf16.msra.mxu0 0
    %1853 = vmatprep.subr.bf16.mxu0 0
    %1854 = vmatpush1.bf16.msra.mxu0 0
    %1855 = vmatprep.subr.bf16.mxu0 0
    %1856 = vmatpush1.bf16.msra.mxu0 0
    %1857 = vmatprep.subr.bf16.mxu0 0
    %1858 = vmatpush1.bf16.msra.mxu0 0
    %1859 = vmatprep.subr.bf16.mxu0 0
    %1860 = vmatpush1.bf16.msra.mxu0 0
    %1861 = vmatprep.subr.bf16.mxu0 0
    %1862 = vmatpush1.bf16.msra.mxu0 0
    %1863 = vmatprep.subr.bf16.mxu0 0
    %1864 = vmatpush1.bf16.msra.mxu0 0
    %1865 = vmatprep.subr.bf16.mxu0 0
    %1866 = vmatpush1.bf16.msra.mxu0 0
    %1867 = vmatprep.subr.bf16.mxu0 0
    %1868 = vmatpush1.bf16.msra.mxu0 0
    %1869 = vmatprep.subr.bf16.mxu0 0
    %1870 = vmatpush1.bf16.msra.mxu0 0
    %1871 = vmatprep.subr.bf16.mxu0 0
    %1872 = vmatpush1.bf16.msra.mxu0 0
    %1873 = vmatprep.subr.bf16.mxu0 0
    %1874 = vmatpush1.bf16.msra.mxu0 0
    %1875 = vmatprep.subr.bf16.mxu0 0
    %1876 = vmatpush1.bf16.msra.mxu0 0
    %1877 = vmatprep.subr.bf16.mxu0 0
    %1878 = vmatpush1.bf16.msra.mxu0 0
    %1879 = vmatprep.mubr.bf16.mxu0 0
    %1880 = vmatmul.mubr.bf16.gmra.mrb[0].mxu0 %v1845
    %v1881 = vpop.f32.mrb[0].mxu0
    %v1882 = vadd.f32 0.0, %v1881
    %v1883 = vpop.f32.mrb[0].mxu0
    %v1884 = vpop.f32.mrb[0].mxu0
    %v1885 = vpop.f32.mrb[0].mxu0
    %1886 = vdwg.mxu0
    %v1887 = vadd.f32 %v175, %v1882
    %v1888 = vxor.u32 %v1887, 2147483648
    %v1889 = vmul.f32 %v1888, 1.442695
    %v1890 = vpow.pop %v1889
    %v1891 = vadd.f32 %v1890, 1.0
    %v1892 = vrcp.pop %v1891
    %v1893 = vmul.f32 1.0, %v1892
    %1894 = vmatprep.subr.bf16.mxu0 0
    %1895 = vmatpush1.bf16.msra.mxu0 %v269
    %1896 = vmatprep.subr.bf16.mxu0 0
    %1897 = vmatpush1.bf16.msra.mxu0 %v270
    %1898 = vmatprep.subr.bf16.mxu0 0
    %1899 = vmatpush1.bf16.msra.mxu0 0
    %1900 = vmatprep.subr.bf16.mxu0 0
    %1901 = vmatpush1.bf16.msra.mxu0 0
    %1902 = vmatprep.subr.bf16.mxu0 0
    %1903 = vmatpush1.bf16.msra.mxu0 0
    %1904 = vmatprep.subr.bf16.mxu0 0
    %1905 = vmatpush1.bf16.msra.mxu0 0
    %1906 = vmatprep.subr.bf16.mxu0 0
    %1907 = vmatpush1.bf16.msra.mxu0 0
    %1908 = vmatprep.subr.bf16.mxu0 0
    %1909 = vmatpush1.bf16.msra.mxu0 0
    %1910 = vmatprep.subr.bf16.mxu0 0
    %1911 = vmatpush1.bf16.msra.mxu0 0
    %1912 = vmatprep.subr.bf16.mxu0 0
    %1913 = vmatpush1.bf16.msra.mxu0 0
    %1914 = vmatprep.subr.bf16.mxu0 0
    %1915 = vmatpush1.bf16.msra.mxu0 0
    %1916 = vmatprep.subr.bf16.mxu0 0
    %1917 = vmatpush1.bf16.msra.mxu0 0
    %1918 = vmatprep.subr.bf16.mxu0 0
    %1919 = vmatpush1.bf16.msra.mxu0 0
    %1920 = vmatprep.subr.bf16.mxu0 0
    %1921 = vmatpush1.bf16.msra.mxu0 0
    %1922 = vmatprep.subr.bf16.mxu0 0
    %1923 = vmatpush1.bf16.msra.mxu0 0
    %1924 = vmatprep.subr.bf16.mxu0 0
    %1925 = vmatpush1.bf16.msra.mxu0 0
    %1926 = vmatprep.mubr.bf16.mxu0 0
    %1927 = vmatmul.mubr.bf16.gmra.mrb[0].mxu0 %v1845
    %v1928 = vpop.f32.mrb[0].mxu0
    %v1929 = vadd.f32 0.0, %v1928
    %v1930 = vpop.f32.mrb[0].mxu0
    %v1931 = vpop.f32.mrb[0].mxu0
    %v1932 = vpop.f32.mrb[0].mxu0
    %1933 = vdwg.mxu0
    %1935 = vrot.lane.b32.xlu0 %v1929, 32
    %v1936 = vpop.permute.xlu0 %1935
    %v1938 = vadd.f32 %v175, %v1936
    %v1939 = vxor.u32 %v1938, 2147483648
    %v1940 = vmul.f32 %v1939, 1.442695
    %v1941 = vpow.pop %v1940
    %v1942 = vadd.f32 %v1941, 1.0
    %v1943 = vrcp.pop %v1942
    %v1944 = vmul.f32 1.0, %v1943
    %1945 = vmatprep.subr.bf16.mxu0 0
    %1946 = vmatpush1.bf16.msra.mxu0 %v332
    %1947 = vmatprep.subr.bf16.mxu0 0
    %1948 = vmatpush1.bf16.msra.mxu0 %v333
    %1949 = vmatprep.subr.bf16.mxu0 0
    %1950 = vmatpush1.bf16.msra.mxu0 0
    %1951 = vmatprep.subr.bf16.mxu0 0
    %1952 = vmatpush1.bf16.msra.mxu0 0
    %1953 = vmatprep.subr.bf16.mxu0 0
    %1954 = vmatpush1.bf16.msra.mxu0 0
    %1955 = vmatprep.subr.bf16.mxu0 0
    %1956 = vmatpush1.bf16.msra.mxu0 0
    %1957 = vmatprep.subr.bf16.mxu0 0
    %1958 = vmatpush1.bf16.msra.mxu0 0
    %1959 = vmatprep.subr.bf16.mxu0 0
    %1960 = vmatpush1.bf16.msra.mxu0 0
    %1961 = vmatprep.subr.bf16.mxu0 0
    %1962 = vmatpush1.bf16.msra.mxu0 0
    %1963 = vmatprep.subr.bf16.mxu0 0
    %1964 = vmatpush1.bf16.msra.mxu0 0
    %1965 = vmatprep.subr.bf16.mxu0 0
    %1966 = vmatpush1.bf16.msra.mxu0 0
    %1967 = vmatprep.subr.bf16.mxu0 0
    %1968 = vmatpush1.bf16.msra.mxu0 0
    %1969 = vmatprep.subr.bf16.mxu0 0
    %1970 = vmatpush1.bf16.msra.mxu0 0
    %1971 = vmatprep.subr.bf16.mxu0 0
    %1972 = vmatpush1.bf16.msra.mxu0 0
    %1973 = vmatprep.subr.bf16.mxu0 0
    %1974 = vmatpush1.bf16.msra.mxu0 0
    %1975 = vmatprep.subr.bf16.mxu0 0
    %1976 = vmatpush1.bf16.msra.mxu0 0
    %1977 = vmatprep.mubr.bf16.mxu0 0
    %1978 = vmatmul.mubr.bf16.gmra.mrb[0].mxu0 %v1845
    %v1979 = vpop.f32.mrb[0].mxu0
    %v1980 = vadd.f32 0.0, %v1979
    %v1981 = vpop.f32.mrb[0].mxu0
    %v1982 = vpop.f32.mrb[0].mxu0
    %v1983 = vpop.f32.mrb[0].mxu0
    %1984 = vdwg.mxu0
    %1986 = vrot.lane.b32.xlu0 %v1980, 64
    %v1987 = vpop.permute.xlu0 %1986
    %v1989 = vadd.f32 %v175, %v1987
    %v1990 = vtanh.pop %v1989
    %1991 = vmatprep.subr.bf16.mxu0 0
    %1992 = vmatpush1.bf16.msra.mxu0 %v390
    %1993 = vmatprep.subr.bf16.mxu0 0
    %1994 = vmatpush1.bf16.msra.mxu0 %v391
    %1995 = vmatprep.subr.bf16.mxu0 0
    %1996 = vmatpush1.bf16.msra.mxu0 0
    %1997 = vmatprep.subr.bf16.mxu0 0
    %1998 = vmatpush1.bf16.msra.mxu0 0
    %1999 = vmatprep.subr.bf16.mxu0 0
    %2000 = vmatpush1.bf16.msra.mxu0 0
    %2001 = vmatprep.subr.bf16.mxu0 0
    %2002 = vmatpush1.bf16.msra.mxu0 0
    %2003 = vmatprep.subr.bf16.mxu0 0
    %2004 = vmatpush1.bf16.msra.mxu0 0
    %2005 = vmatprep.subr.bf16.mxu0 0
    %2006 = vmatpush1.bf16.msra.mxu0 0
    %2007 = vmatprep.subr.bf16.mxu0 0
    %2008 = vmatpush1.bf16.msra.mxu0 0
    %2009 = vmatprep.subr.bf16.mxu0 0
    %2010 = vmatpush1.bf16.msra.mxu0 0
    %2011 = vmatprep.subr.bf16.mxu0 0
    %2012 = vmatpush1.bf16.msra.mxu0 0
    %2013 = vmatprep.subr.bf16.mxu0 0
    %2014 = vmatpush1.bf16.msra.mxu0 0
    %2015 = vmatprep.subr.bf16.mxu0 0
    %2016 = vmatpush1.bf16.msra.mxu0 0
    %2017 = vmatprep.subr.bf16.mxu0 0
    %2018 = vmatpush1.bf16.msra.mxu0 0
    %2019 = vmatprep.subr.bf16.mxu0 0
    %2020 = vmatpush1.bf16.msra.mxu0 0
    %2021 = vmatprep.subr.bf16.mxu0 0
    %2022 = vmatpush1.bf16.msra.mxu0 0
    %2023 = vmatprep.mubr.bf16.mxu0 0
    %2024 = vmatmul.mubr.bf16.gmra.mrb[0].mxu0 %v1845
    %v2025 = vpop.f32.mrb[0].mxu0
    %v2026 = vadd.f32 0.0, %v2025
    %v2027 = vpop.f32.mrb[0].mxu0
    %v2028 = vpop.f32.mrb[0].mxu0
    %v2029 = vpop.f32.mrb[0].mxu0
    %2030 = vdwg.mxu0
    %2032 = vrot.lane.b32.xlu0 %v2026, 96
    %v2033 = vpop.permute.xlu0 %2032
    %v2035 = vadd.f32 %v175, %v2033
    %v2036 = vxor.u32 %v2035, 2147483648
    %v2037 = vmul.f32 %v2036, 1.442695
    %v2038 = vpow.pop %v2037
    %v2039 = vadd.f32 %v2038, 1.0
    %v2040 = vrcp.pop %v2039
    %v2041 = vmul.f32 1.0, %v2040
    %v2042 = vmul.f32 %v1944, %v1838
    %2044 = vrot.lane.b32.xlu0 %v1990, 64
    %v2045 = vpop.permute.xlu0 %2044
    %v2047 = vmul.f32 %v1893, %v2045
    %2049 = vrot.lane.b32.xlu0 %v2047, 32
    %v2050 = vpop.permute.xlu0 %2049
    %v2052 = vadd.f32 %v2042, %v2050
    %v2053 = vtanh.pop %v2052
    %2055 = vrot.lane.b32.xlu0 %v2053, 64
    %v2056 = vpop.permute.xlu0 %2055
    %v2058 = vmul.f32 %v2041, %v2056
    %vm2059 = vcmp.gt.s32.totalorder %v194, 7
    %v2060 = vsel %vm2059, 1, 0
    %2061 = vset.pattern.permute.xlu0 0
    %2062 = vperm.xlu0 %2061, %v2060
    %v2063 = vpop.permute.xlu0 %2062
    %vm2064 = vcmp.eq.s32.totalorder %v2063, 1
    %v2065 = vsel %vm2064, %v2058, %v1839
    %v2066 = vpack.c.bf16 %v2065, %v2065
    %v2067 = vld [vmem:[%s11] sm:$0xf]
    %v2068 = vld [vmem:[%s11 + $0x4] sm:$0xf]
    %v2069 = vld [vmem:[%s11 + $0x8] sm:$0xf]
    %v2070 = vld [vmem:[%s11 + $0xc] sm:$0xf]
    %v2071 = vld [vmem:[%s12] sm:$0x1]
    %v2073 = vlaneseq
    %v2074 = vshrl.u32 %v2073, 7
    %v2075 = vsub.s32 0, %v2074
    %v2076 = vrot.slane %v2071, %v2075
    %2079 = vrot.lane.b32.xlu0 %v2066, 32
    %v2080 = vpop.permute.xlu0 %2079
    %v2085 = vunpack.c.l.b16 %v2067
    %v2086 = vunpack.c.l.b16 %v2068
    %v2087 = vunpack.c.l.b16 %v2069
    %v2088 = vunpack.c.l.b16 %v2070
    %v2089 = vpack.c.b16 %v2086, %v2085
    %v2090 = vpack.c.b16 %v2088, %v2087
    %v2094 = vsel %vm210, %v2080, 0
    %2096 = vmatprep.subr.bf16.mxu0 0
    %2097 = vmatpush1.bf16.msra.mxu0 %v2089
    %2098 = vmatprep.subr.bf16.mxu0 0
    %2099 = vmatpush1.bf16.msra.mxu0 %v2090
    %2100 = vmatprep.subr.bf16.mxu0 0
    %2101 = vmatpush1.bf16.msra.mxu0 0
    %2102 = vmatprep.subr.bf16.mxu0 0
    %2103 = vmatpush1.bf16.msra.mxu0 0
    %2104 = vmatprep.subr.bf16.mxu0 0
    %2105 = vmatpush1.bf16.msra.mxu0 0
    %2106 = vmatprep.subr.bf16.mxu0 0
    %2107 = vmatpush1.bf16.msra.mxu0 0
    %2108 = vmatprep.subr.bf16.mxu0 0
    %2109 = vmatpush1.bf16.msra.mxu0 0
    %2110 = vmatprep.subr.bf16.mxu0 0
    %2111 = vmatpush1.bf16.msra.mxu0 0
    %2112 = vmatprep.subr.bf16.mxu0 0
    %2113 = vmatpush1.bf16.msra.mxu0 0
    %2114 = vmatprep.subr.bf16.mxu0 0
    %2115 = vmatpush1.bf16.msra.mxu0 0
    %2116 = vmatprep.subr.bf16.mxu0 0
    %2117 = vmatpush1.bf16.msra.mxu0 0
    %2118 = vmatprep.subr.bf16.mxu0 0
    %2119 = vmatpush1.bf16.msra.mxu0 0
    %2120 = vmatprep.subr.bf16.mxu0 0
    %2121 = vmatpush1.bf16.msra.mxu0 0
    %2122 = vmatprep.subr.bf16.mxu0 0
    %2123 = vmatpush1.bf16.msra.mxu0 0
    %2124 = vmatprep.subr.bf16.mxu0 0
    %2125 = vmatpush1.bf16.msra.mxu0 0
    %2126 = vmatprep.subr.bf16.mxu0 0
    %2127 = vmatpush1.bf16.msra.mxu0 0
    %2128 = vmatprep.mubr.bf16.mxu0 0
    %2129 = vmatmul.mubr.bf16.gmra.mrb[0].mxu0 %v2094
    %v2130 = vpop.f32.mrb[0].mxu0
    %v2131 = vadd.f32 %v2076, %v2130
    %v2132 = vpop.f32.mrb[0].mxu0
    %v2133 = vpop.f32.mrb[0].mxu0
    %v2134 = vpop.f32.mrb[0].mxu0
    %2135 = vdwg.mxu0
    %v2136 = vld [vmem:[%s10] sm:$0xff]
    %v2137 = vpack.c.bf16 %v2136, %v2136
    %v2138 = vld [vmem:[%s13] sm:$0xf]
    %v2139 = vld [vmem:[%s13 + $0x4] sm:$0xf]
    %v2140 = vld [vmem:[%s13 + $0x8] sm:$0xf]
    %v2141 = vld [vmem:[%s13 + $0xc] sm:$0xf]
    %v2142 = vld [vmem:[#allocation3] sm:$0x1]
    %v2144 = vlaneseq
    %v2145 = vshrl.u32 %v2144, 7
    %v2146 = vsub.s32 0, %v2145
    %v2147 = vrot.slane %v2142, %v2146
    %v2153 = vunpack.c.l.b16 %v2138
    %v2154 = vunpack.c.l.b16 %v2139
    %v2155 = vunpack.c.l.b16 %v2140
    %v2156 = vunpack.c.l.b16 %v2141
    %v2157 = vpack.c.b16 %v2154, %v2153
    %v2158 = vpack.c.b16 %v2156, %v2155
    %v2162 = vsel %vm210, %v2137, 0
    %2164 = vmatprep.subr.bf16.mxu0 0
    %2165 = vmatpush1.bf16.msra.mxu0 %v2157
    %2166 = vmatprep.subr.bf16.mxu0 0
    %2167 = vmatpush1.bf16.msra.mxu0 %v2158
    %2168 = vmatprep.subr.bf16.mxu0 0
    %2169 = vmatpush1.bf16.msra.mxu0 0
    %2170 = vmatprep.subr.bf16.mxu0 0
    %2171 = vmatpush1.bf16.msra.mxu0 0
    %2172 = vmatprep.subr.bf16.mxu0 0
    %2173 = vmatpush1.bf16.msra.mxu0 0
    %2174 = vmatprep.subr.bf16.mxu0 0
    %2175 = vmatpush1.bf16.msra.mxu0 0
    %2176 = vmatprep.subr.bf16.mxu0 0
    %2177 = vmatpush1.bf16.msra.mxu0 0
    %2178 = vmatprep.subr.bf16.mxu0 0
    %2179 = vmatpush1.bf16.msra.mxu0 0
    %2180 = vmatprep.subr.bf16.mxu0 0
    %2181 = vmatpush1.bf16.msra.mxu0 0
    %2182 = vmatprep.subr.bf16.mxu0 0
    %2183 = vmatpush1.bf16.msra.mxu0 0
    %2184 = vmatprep.subr.bf16.mxu0 0
    %2185 = vmatpush1.bf16.msra.mxu0 0
    %2186 = vmatprep.subr.bf16.mxu0 0
    %2187 = vmatpush1.bf16.msra.mxu0 0
    %2188 = vmatprep.subr.bf16.mxu0 0
    %2189 = vmatpush1.bf16.msra.mxu0 0
    %2190 = vmatprep.subr.bf16.mxu0 0
    %2191 = vmatpush1.bf16.msra.mxu0 0
    %2192 = vmatprep.subr.bf16.mxu0 0
    %2193 = vmatpush1.bf16.msra.mxu0 0
    %2194 = vmatprep.subr.bf16.mxu0 0
    %2195 = vmatpush1.bf16.msra.mxu0 0
    %2196 = vmatprep.mubr.bf16.mxu0 0
    %2197 = vmatmul.mubr.bf16.gmra.mrb[0].mxu0 %v2162
    %v2198 = vpop.f32.mrb[0].mxu0
    %v2199 = vadd.f32 %v2147, %v2198
    %v2200 = vpop.f32.mrb[0].mxu0
    %v2201 = vpop.f32.mrb[0].mxu0
    %v2202 = vpop.f32.mrb[0].mxu0
    %2203 = vdwg.mxu0
    %v2204 = vsel %vm210, %v2131, 0.0
    %2205 = vadd.xlane.f32.xlu0 %v2204
    %v2206 = vpop.xlane.xlu0 %2205
    %v2207 = vsel %vm210, %v2199, 0.0
    %2208 = vadd.xlane.f32.xlu0 %v2207
    %v2209 = vpop.xlane.xlu0 %2208
    %v2210 = vrcp.pop 32.0
    %v2211 = vmul.f32 %v2206, %v2210
    %v2212 = vmul.f32 %v2209, %v2210
    %v2213 = vsub.f32 %v2131, %v2211
    %v2214 = vsub.f32 %v2199, %v2212
    %v2215 = vmul.f32 %v2213, %v2213
    %v2216 = vmul.f32 %v2214, %v2214
    %v2217 = vsel %vm210, %v2215, 0.0
    %2218 = vadd.xlane.f32.xlu0 %v2217
    %v2219 = vpop.xlane.xlu0 %2218
    %v2220 = vsel %vm210, %v2216, 0.0
    %2221 = vadd.xlane.f32.xlu0 %v2220
    %v2222 = vpop.xlane.xlu0 %2221
    %v2223 = vmul.f32 %v2219, %v2210
    %v2224 = vmul.f32 %v2222, %v2210
    %v2225 = vadd.f32 %v2223, 1e-05
    %v2226 = vadd.f32 %v2224, 1e-05
    %v2227 = vrsqrt.pop %v2225
    %v2228 = vrsqrt.pop %v2226
    %v2229 = vmul.f32 %v2213, %v2227
    %v2230 = vmul.f32 %v2214, %v2228
    %v2231 = vld [vmem:[%s15] sm:$0xff]
    %v2232 = vld [vmem:[%s15 + $0x8] sm:$0xff]
    %v2233 = vmul.f32 %v2229, %v2231
    %v2234 = vmul.f32 %v2230, %v2232
    %v2235 = vld [vmem:[%s16] sm:$0xff]
    %v2236 = vld [vmem:[%s16 + $0x8] sm:$0xff]
    %v2237 = vadd.f32 %v2233, %v2235
    %v2238 = vadd.f32 %v2234, %v2236
    %v2239 = vpack.c.bf16 %v2237, %v2237
    %v2240 = vpack.c.bf16 %v2238, %v2238
    %v2242 = vsel %vm210, %v2239, 0
    %v2245 = vsel %vm210, %v2240, 0
    %2247 = vmatprep.subr.bf16.mxu0 0
    %2248 = vmatpush1.bf16.xpose.msra.mxu0 %v2245
    %2249 = vmatprep.subr.bf16.mxu0 0
    %2250 = vmatpush1.bf16.xpose.msra.mxu0 0
    %2251 = vmatprep.subr.bf16.mxu0 0
    %2252 = vmatpush1.bf16.xpose.msra.mxu0 0
    %2253 = vmatprep.subr.bf16.mxu0 0
    %2254 = vmatpush1.bf16.xpose.msra.mxu0 0
    %2255 = vmatprep.subr.bf16.mxu0 0
    %2256 = vmatpush1.bf16.xpose.msra.mxu0 0
    %2257 = vmatprep.subr.bf16.mxu0 0
    %2258 = vmatpush1.bf16.xpose.msra.mxu0 0
    %2259 = vmatprep.subr.bf16.mxu0 0
    %2260 = vmatpush1.bf16.xpose.msra.mxu0 0
    %2261 = vmatprep.subr.bf16.mxu0 0
    %2262 = vmatpush1.bf16.xpose.msra.mxu0 0
    %2263 = vmatprep.subr.bf16.mxu0 0
    %2264 = vmatpush1.bf16.xpose.msra.mxu0 0
    %2265 = vmatprep.subr.bf16.mxu0 0
    %2266 = vmatpush1.bf16.xpose.msra.mxu0 0
    %2267 = vmatprep.subr.bf16.mxu0 0
    %2268 = vmatpush1.bf16.xpose.msra.mxu0 0
    %2269 = vmatprep.subr.bf16.mxu0 0
    %2270 = vmatpush1.bf16.xpose.msra.mxu0 0
    %2271 = vmatprep.subr.bf16.mxu0 0
    %2272 = vmatpush1.bf16.xpose.msra.mxu0 0
    %2273 = vmatprep.subr.bf16.mxu0 0
    %2274 = vmatpush1.bf16.xpose.msra.mxu0 0
    %2275 = vmatprep.subr.bf16.mxu0 0
    %2276 = vmatpush1.bf16.xpose.msra.mxu0 0
    %2277 = vmatprep.subr.bf16.mxu0 0
    %2278 = vmatpush1.bf16.xpose.msra.mxu0 0
    %2279 = vmatprep.mubr.bf16.mxu0 0
    %2280 = vmatmul.mubr.bf16.gmra.mrb[0].mxu0 %v2242
    %v2281 = vpop.f32.mrb[0].mxu0
    %v2282 = vadd.f32 0.0, %v2281
    %v2283 = vpop.f32.mrb[0].mxu0
    %v2284 = vpop.f32.mrb[0].mxu0
    %v2285 = vpop.f32.mrb[0].mxu0
    %2286 = vdwg.mxu0
    %s2287 = sld [smem:[#allocation2]]
    %v2288 = vstv %s2287
    %v2289 = vmul.f32 %v2282, %v2288
    %vm2290 = vcmask 64512
    %2291 = vst.msk [vmem:[%s18] sm:$0xff] %vm2290, %v2289
    // Predicated region
    $region78: #{clip_forward.1} parent=1 // pred_check
      _
    $region79: #{clip_forward.1} parent=1 // pred_check_branch
      %2293 = sbr.rel (0) target = $region81
    $region80: #{clip_forward.1} parent=1 // pred_region
      _
    $region81: #{clip_forward.1} parent=1 // pred_fallthru
      _
    // Predicated region
    $region82: #{clip_forward.1} parent=1 // pred_check
      _
    $region83: #{clip_forward.1} parent=1 // pred_check_branch
      %2295 = sbr.rel (0) target = $region85
    $region84: #{clip_forward.1} parent=1 // pred_region
      _
    $region85: #{clip_forward.1} parent=1 // pred_fallthru
      _
    %2296 = vsyncpa [#allocation4], 1

</llo_original>
